<compile_context>
chip_gen: v7x
topology: tpu7x:2x2x1
jax: 0.10.0
libtpu: 0.0.40
codegen_flags: <defaults>
</compile_context>

<pallas_src>
import functools

import jax
import jax.numpy as jnp
from jax import lax
from jax.experimental import pallas as pl
from jax.experimental.pallas import tpu as pltpu


# --------------------------------------------------------------------------- kernel


def _rpn_head_kernel(body_ref, top_ref, bot_ref, w3_ref, b3_ref, wh_ref, bh_ref,
                     out_ref, *, TH, W, C, P):
    """Processes TH (padded-)image rows of one batch element per grid step.

    body_ref: (TH*W, C)  rows of this tile, flattened row-major over W (compute dtype)
    top_ref : (1, W, C)  image row just above the tile (clamped at the border)
    bot_ref : (1, W, C)  image row just below the tile (clamped at the border)
    w3_ref  : (3, 3C, C) conv taps: [ky] -> (3*Cin, Cout), kx-major lane order
    b3_ref  : (1, C)     conv bias (f32)
    wh_ref  : (C, P)     fused [objectness | deltas] 1x1 head, zero-padded to P
    bh_ref  : (1, P)     fused head bias (f32), zero-padded
    out_ref : (TH*W, P)  lane-dense fused head output (compute dtype)
    """
    r = pl.program_id(1)
    num_r = pl.num_programs(1)
    cdt = w3_ref.dtype                        # MXU operand dtype (bf16 or f32)

    # Halo rows; zeroed at the top/bottom image borders (conv padding = 1).
    top_scale = jnp.where(r == 0, 0.0, 1.0).astype(cdt)
    bot_scale = jnp.where(r == num_r - 1, 0.0, 1.0).astype(cdt)
    top = top_ref[0] * top_scale                              # (W, C)
    bot = bot_ref[0] * bot_scale                              # (W, C)
    body = body_ref[...]                                      # (TH*W, C)

    nflat = (TH + 2) * W
    zrow = jnp.zeros((1, C), cdt)

    # Position of each flattened row inside its image row: multiplicative masks
    # realize the conv's left/right zero padding and kill cross-row wraparound.
    wpos = lax.broadcasted_iota(jnp.int32, (nflat, 1), 0) % W
    mask_l = (wpos != 0).astype(cdt)
    mask_r = (wpos != W - 1).astype(cdt)

    # kx-shifted operands, lane-concatenated into one K=3C contraction operand.
    col = jnp.concatenate([top, body, bot], axis=0)                          # kx = 1
    view_l = jnp.concatenate([zrow, top, body, bot[:-1]], axis=0) * mask_l   # kx = 0
    view_r = jnp.concatenate([top[1:], body, bot, zrow], axis=0) * mask_r    # kx = 2
    xcat = jnp.concatenate([view_l, col, view_r], axis=1)                    # (nflat, 3C)

    # 3x3 conv as 3 MXU matmuls (one per ky) with K=3C, accumulated as an f32
    # value chain. Row windows are sublane-aligned views because W % 8 == 0.
    acc = jnp.dot(xcat[0 * W:0 * W + TH * W, :], w3_ref[0],
                  preferred_element_type=jnp.float32)
    acc = acc + jnp.dot(xcat[1 * W:1 * W + TH * W, :], w3_ref[1],
                        preferred_element_type=jnp.float32)
    acc = acc + jnp.dot(xcat[2 * W:2 * W + TH * W, :], w3_ref[2],
                        preferred_element_type=jnp.float32)

    # Bias + ReLU in f32, then the fused (objectness | deltas) head matmul with a
    # lane-dense (128-wide) output block.
    t = jnp.maximum(acc + b3_ref[...], 0.0)
    out = jnp.dot(t.astype(cdt), wh_ref[...],
                  preferred_element_type=jnp.float32) + bh_ref[...]
    out_ref[...] = out.astype(out_ref.dtype)


# --------------------------------------------------------------------------- tiling


def _cdiv(a, b):
    return -(-a // b)


def _round_up(x, m):
    return ((x + m - 1) // m) * m


def _vmem_capacity_bytes():
    """Physical VMEM of the attached TPU generation (fallback: 128 MiB)."""
    try:
        cap = getattr(pltpu.get_tpu_info(), "vmem_capacity_bytes", None)
        if cap:
            return int(cap)
    except Exception:
        pass
    return 128 << 20


def _choose_row_tile(N, H, Wp, C, cdt_bytes, vmem_cap):
    """Row tile sized from the chip's VMEM (~8 MiB body block on 128 MiB parts,
    ~4 MiB on v7x's 64 MiB), with >= 2 total grid steps so both v7x TensorCores
    get work even for single-image inference."""
    budget = max(vmem_cap // 16, 1 << 20)
    th = max(1, min(H, budget // max(Wp * C * cdt_bytes, 1)))
    if N * _cdiv(H, th) < 2 and H > 1:
        th = _cdiv(H, 2)
    r = _cdiv(H, th)
    th = _cdiv(H, r)              # balance tile heights across the R steps
    return th, r


def _vmem_limit_bytes(TH, Wp, C, P, cdt_bytes, vmem_cap):
    blk = TH * Wp
    nflat = (TH + 2) * Wp
    est = (2 * (blk + 2 * Wp) * C * cdt_bytes        # double-buffered input blocks
           + 2 * blk * P * cdt_bytes                 # double-buffered output blocks
           + 2 * (9 * C * C + C * P) * cdt_bytes + 2 * (C + P) * 4   # weights/biases
           + 5 * nflat * C * cdt_bytes               # shifted views + xcat
           + 2 * blk * C * 4                         # f32 acc + relu temp
           + blk * P * 4)                            # f32 head output before cast
    est = 2 * est + (4 << 20)                        # headroom for relayout temps
    lo = 16 << 20
    hi = max(int(0.7 * vmem_cap), lo)                # leave scratch room (v7x: 64 MiB)
    return int(min(max(est, lo), hi))


# --------------------------------------------------------------------------- wrapper


def rpn_head_single_level(x, params, *, row_tile=None,
                          channels_last_input=False, channels_last_output=False):
    """RPN head for one feature level.

    x: (N, C, H, W) by default, or (N, H, W, C) if channels_last_input.
    Returns (objectness_logits, anchor_deltas) in NCHW by default (matching the
    PyTorch module), or NHWC if channels_last_output (saves two HBM transposes)."""
    if channels_last_input:
        N, H, W, C = x.shape
        x_nhwc = x
    else:
        N, C, H, W = x.shape
        x_nhwc = jnp.transpose(x, (0, 2, 3, 1))               # (N, H, W, C)

    w3, b3 = params["conv_w"], params["conv_b"]
    wh, bh = params["head_w"], params["head_b"]
    A, Ad = params["num_anchors"], params["num_deltas"]
    P = wh.shape[1]
    assert w3.shape == (3, 3 * C, C), "channel mismatch between params and feature map"
    cdt = w3.dtype
    cdt_bytes = jnp.dtype(cdt).itemsize

    Wp = _round_up(W, 8)                      # sublane-aligned row length
    vmem_cap = _vmem_capacity_bytes()
    if row_tile is not None:
        if int(row_tile) < 1:
            raise ValueError(f"row_tile must be >= 1, got {row_tile}")
        TH = min(int(row_tile), H)
        if N == 1 and H > 1:                  # keep >=2 parallel grid steps (v7x)
            TH = min(TH, _cdiv(H, 2))
        R = _cdiv(H, TH)
    else:
        TH, R = _choose_row_tile(N, H, Wp, C, cdt_bytes, vmem_cap)
    Hp = R * TH

    # Cast to the compute dtype fused with the layout change; zero-pad H/W so every
    # grid step is full-size and every row slice is sublane-aligned. The padded
    # zeros also realize the conv's zero padding at the right/bottom image edges.
    x_nhwc = x_nhwc.astype(cdt)
    if Hp != H or Wp != W:
        x_nhwc = jnp.pad(x_nhwc, ((0, 0), (0, Hp - H), (0, Wp - W), (0, 0)))
    x_flat = x_nhwc.reshape(N, Hp * Wp, C)    # free dim-collapse reshape

    kernel = functools.partial(_rpn_head_kernel, TH=TH, W=Wp, C=C, P=P)

    cost = pl.CostEstimate(
        flops=int(N * Hp * Wp * (2 * 9 * C * C + 2 * C * P)),
        transcendentals=0,
        bytes_accessed=int(N * Hp * Wp * (C + P) * cdt_bytes
                           + 2 * N * R * Wp * C * cdt_bytes
                           + (9 * C * C + C * P) * cdt_bytes + (C + P) * 4))

    out = pl.pallas_call(
        kernel,
        out_shape=jax.ShapeDtypeStruct((N, Hp * Wp, P), cdt),
        grid=(N, R),
        in_specs=[
            # body rows of the tile
            pl.BlockSpec((pl.Squeezed(), TH * Wp, C), lambda n, r: (n, r, 0)),
            # halo row above / below (index clamped at borders; masked in-kernel)
            pl.BlockSpec((pl.Squeezed(), 1, Wp, C),
                         lambda n, r: (n, jnp.maximum(r * TH - 1, 0), 0, 0)),
            pl.BlockSpec((pl.Squeezed(), 1, Wp, C),
                         lambda n, r: (n, jnp.minimum(r * TH + TH, Hp - 1), 0, 0)),
            # weights / biases (constant block index -> fetched once, kept resident)
            pl.BlockSpec((3, 3 * C, C), lambda n, r: (0, 0, 0)),
            pl.BlockSpec((1, C), lambda n, r: (0, 0)),
            pl.BlockSpec((C, P), lambda n, r: (0, 0)),
            pl.BlockSpec((1, P), lambda n, r: (0, 0)),
        ],
        out_specs=pl.BlockSpec((pl.Squeezed(), TH * Wp, P), lambda n, r: (n, r, 0)),
        compiler_params=pltpu.CompilerParams(
            dimension_semantics=("parallel", "parallel"),
            vmem_limit_bytes=_vmem_limit_bytes(TH, Wp, C, P, cdt_bytes, vmem_cap)),
        cost_estimate=cost,
    )(x_flat, x_nhwc, x_nhwc, w3, b3, wh, bh)

    head = out.reshape(N, Hp, Wp, P)[:, :H, :W, :]
    if channels_last_output:
        obj = head[..., :A].astype(x.dtype)                       # (N, H, W, A)
        dlt = head[..., A:A + Ad].astype(x.dtype)                 # (N, H, W, A*box_dim)
    else:
        obj = jnp.transpose(head[..., :A], (0, 3, 1, 2)).astype(x.dtype)
        dlt = jnp.transpose(head[..., A:A + Ad], (0, 3, 1, 2)).astype(x.dtype)
    return obj, dlt


def customized_rpn_head_forward(features, params, *, row_tile=None,
                                channels_last_input=False, channels_last_output=False):
    """features: list of (N, C, Hi, Wi) arrays -> (list of logits, list of deltas)."""
    pred_objectness_logits, pred_anchor_deltas = [], []
    for x in features:
        obj, dlt = rpn_head_single_level(
            x, params, row_tile=row_tile,
            channels_last_input=channels_last_input,
            channels_last_output=channels_last_output)
        pred_objectness_logits.append(obj)
        pred_anchor_deltas.append(dlt)
    return pred_objectness_logits, pred_anchor_deltas


# --------------------------------------------------------------------------- params


def prepare_params(torch_params, compute_dtype=jnp.bfloat16):
    """Converts PyTorch-layout weights (OIHW, (O,)) into the fused kernel layout.

    compute_dtype=jnp.bfloat16 is the recommended setting on all generations
    (especially v5e, which is MXU-bound); jnp.float32 gives an exact path."""
    cw = jnp.asarray(torch_params["conv_w"])      # (C, C, 3, 3)
    ow = jnp.asarray(torch_params["obj_w"])       # (A, C, 1, 1)
    dw = jnp.asarray(torch_params["del_w"])       # (A*box_dim, C, 1, 1)
    cb = jnp.asarray(torch_params["conv_b"])      # (C,)
    ob = jnp.asarray(torch_params["obj_b"])       # (A,)
    db = jnp.asarray(torch_params["del_b"])       # (A*box_dim,)
    C, A, Ad = cw.shape[0], ow.shape[0], dw.shape[0]
    P = ((A + Ad + 127) // 128) * 128             # lane-dense fused head width

    # (Cout, Cin, ky, kx) -> (ky, kx, Cin, Cout) -> (ky, kx*Cin, Cout): kx fused into
    # the contraction dim, matching the kernel's [view_l | col | view_r] lane order.
    w3 = jnp.transpose(cw, (2, 3, 1, 0)).reshape(3, 3 * C, C)
    wh = jnp.concatenate([ow[:, :, 0, 0], dw[:, :, 0, 0]], axis=0).T   # (C, A+Ad)
    wh = jnp.pad(wh, ((0, 0), (0, P - A - Ad)))
    bh = jnp.pad(jnp.concatenate([ob, db]), (0, P - A - Ad))

    return {
        "conv_w": w3.astype(compute_dtype),
        "conv_b": cb.reshape(1, C).astype(jnp.float32),
        "head_w": wh.astype(compute_dtype),
        "head_b": bh.reshape(1, P).astype(jnp.float32),
        "num_anchors": A,
        "num_deltas": Ad,
    }


def init_torch_params(key, in_channels, num_anchors, box_dim=4):
    """PyTorch-layout weights.  The module inits weights ~ N(0, 0.01) and biases to 0;
    small random biases are used here so the bias path of the kernel is exercised."""
    C, A, Ad = in_channels, num_anchors, num_anchors * box_dim
    ks = jax.random.split(key, 6)
    return {
        "conv_w": 0.01 * jax.random.normal(ks[0], (C, C, 3, 3), jnp.float32),
        "conv_b": 0.01 * jax.random.normal(ks[1], (C,), jnp.float32),
        "obj_w": 0.01 * jax.random.normal(ks[2], (A, C, 1, 1), jnp.float32),
        "obj_b": 0.01 * jax.random.normal(ks[3], (A,), jnp.float32),
        "del_w": 0.01 * jax.random.normal(ks[4], (Ad, C, 1, 1), jnp.float32),
        "del_b": 0.01 * jax.random.normal(ks[5], (Ad,), jnp.float32),
    }


def _reference_forward(x, tp):
    """Pure-JAX reference matching the PyTorch module (NCHW, OIHW)."""
    dn = ("NCHW", "OIHW", "NCHW")
    t = lax.conv_general_dilated(x, tp["conv_w"], (1, 1), "SAME", dimension_numbers=dn)
    t = jax.nn.relu(t + tp["conv_b"][None, :, None, None])
    obj = lax.conv_general_dilated(t, tp["obj_w"], (1, 1), "VALID",
                                   dimension_numbers=dn) + tp["obj_b"][None, :, None, None]
    dlt = lax.conv_general_dilated(t, tp["del_w"], (1, 1), "VALID",
                                   dimension_numbers=dn) + tp["del_b"][None, :, None, None]
    return obj, dlt


# --------------------------------------------------------------------------- demo


if __name__ == "__main__":
    key = jax.random.PRNGKey(0)
    N, C = 2, 4
    num_anchors, box_dim = 3, 4

    kp, kx1, kx2, kx3 = jax.random.split(key, 4)
    torch_params = init_torch_params(kp, C, num_anchors, box_dim)

    # Three feature levels; the 7x7 level exercises the W-padding / edge-mask path
    # and (with row_tile=4) the H-padding + multi-tile halo path.
    features = [jax.random.normal(kx1, (N, C, 16, 16), jnp.float32),
                jax.random.normal(kx2, (N, C, 8, 8), jnp.float32),
                jax.random.normal(kx3, (N, C, 7, 7), jnp.float32)]

    ok = True
    # (compute dtype, row_tile, strict f32 check?)
    configs = ((jnp.float32, None, True),     # exact path, auto (chip-aware) tiling
               (jnp.bfloat16, 4, False))      # default bf16 path, multi-tile halos
    for cdt, row_tile, strict in configs:
        params = prepare_params(torch_params, compute_dtype=cdt)
        logits, deltas = customized_rpn_head_forward(features, params, row_tile=row_tile)
        jax.block_until_ready(logits)
        jax.block_until_ready(deltas)

        for x, obj, dlt in zip(features, logits, deltas):
            obj_ref, dlt_ref = _reference_forward(x, torch_params)
            ok &= obj.shape == (x.shape[0], num_anchors, x.shape[2], x.shape[3])
            ok &= dlt.shape == (x.shape[0], num_anchors * box_dim, x.shape[2], x.shape[3])
            for got, ref in ((obj, obj_ref), (dlt, dlt_ref)):
                if strict:
                    ok &= bool(jnp.allclose(got, ref, atol=1e-5, rtol=1e-5))
                else:  # bf16-operand/output path: scale-aware tolerance
                    tol = 0.05 * float(jnp.max(jnp.abs(ref))) + 5e-5
                    ok &= bool(jnp.max(jnp.abs(got - ref)) <= tol)

    print("KERNEL_OK" if ok else "KERNEL_MISMATCH")
</pallas_src>

<mosaic_0001>
module attributes {stable_mosaic.version = 11 : i64} {
  func.func @_rpn_head_kernel(%arg0: i32, %arg1: i32, %arg2: memref<1x256x4xf32, #tpu.memory_space<vmem>>, %arg3: memref<1x1x16x4xf32, #tpu.memory_space<vmem>>, %arg4: memref<1x1x16x4xf32, #tpu.memory_space<vmem>>, %arg5: memref<3x12x4xf32, #tpu.memory_space<vmem>>, %arg6: memref<1x4xf32, #tpu.memory_space<vmem>>, %arg7: memref<4x128xf32, #tpu.memory_space<vmem>>, %arg8: memref<1x128xf32, #tpu.memory_space<vmem>>, %arg9: memref<1x256x128xf32, #tpu.memory_space<vmem>>) attributes {dimension_semantics = [#tpu.dimension_semantics<parallel>, #tpu.dimension_semantics<parallel>], iteration_bounds = array<i64: 2, 1>, scalar_prefetch = 0 : i64, scratch_operands = 0 : i64, tpu.core_type = #tpu.core_type<tc>, window_params = [{transform_indices = @transform_0, window_bounds = array<i64: 1, 256, 4>}, {transform_indices = @transform_1, window_bounds = array<i64: 1, 1, 16, 4>}, {transform_indices = @transform_2, window_bounds = array<i64: 1, 1, 16, 4>}, {pipeline_mode = #tpu.pipeline_mode<synchronous>, transform_indices = @transform_3, window_bounds = array<i64: 3, 12, 4>}, {pipeline_mode = #tpu.pipeline_mode<synchronous>, transform_indices = @transform_4, window_bounds = array<i64: 1, 4>}, {pipeline_mode = #tpu.pipeline_mode<synchronous>, transform_indices = @transform_5, window_bounds = array<i64: 4, 128>}, {pipeline_mode = #tpu.pipeline_mode<synchronous>, transform_indices = @transform_6, window_bounds = array<i64: 1, 128>}, {transform_indices = @transform_7, window_bounds = array<i64: 1, 256, 128>}]} {
    %c0_i32 = arith.constant 0 : i32
    %0 = arith.cmpi eq, %arg1, %c0_i32 : i32
    %cst = arith.constant 0.000000e+00 : f32
    %cst_0 = arith.constant 1.000000e+00 : f32
    %1 = arith.select %0, %cst, %cst_0 : f32
    %c0_i32_1 = arith.constant 0 : i32
    %2 = arith.cmpi eq, %arg1, %c0_i32_1 : i32
    %cst_2 = arith.constant 0.000000e+00 : f32
    %cst_3 = arith.constant 1.000000e+00 : f32
    %3 = arith.select %2, %cst_2, %cst_3 : f32
    %c0 = arith.constant 0 : index
    %c0_4 = arith.constant 0 : index
    %c0_5 = arith.constant 0 : index
    %c0_6 = arith.constant 0 : index
    %4 = vector.load %arg3[%c0, %c0_4, %c0_5, %c0_6] : memref<1x1x16x4xf32, #tpu.memory_space<vmem>>, vector<1x1x16x4xf32>
    %5 = vector.shape_cast %4 : vector<1x1x16x4xf32> to vector<16x4xf32>
    %6 = vector.broadcast %1 : f32 to vector<16x4xf32>
    %7 = arith.mulf %5, %6 : vector<16x4xf32>
    %c0_7 = arith.constant 0 : index
    %c0_8 = arith.constant 0 : index
    %c0_9 = arith.constant 0 : index
    %c0_10 = arith.constant 0 : index
    %8 = vector.load %arg4[%c0_7, %c0_8, %c0_9, %c0_10] : memref<1x1x16x4xf32, #tpu.memory_space<vmem>>, vector<1x1x16x4xf32>
    %9 = vector.shape_cast %8 : vector<1x1x16x4xf32> to vector<16x4xf32>
    %10 = vector.broadcast %3 : f32 to vector<16x4xf32>
    %11 = arith.mulf %9, %10 : vector<16x4xf32>
    %c0_11 = arith.constant 0 : index
    %c0_12 = arith.constant 0 : index
    %c0_13 = arith.constant 0 : index
    %12 = vector.load %arg2[%c0_11, %c0_12, %c0_13] : memref<1x256x4xf32, #tpu.memory_space<vmem>>, vector<1x256x4xf32>
    %13 = vector.shape_cast %12 : vector<1x256x4xf32> to vector<256x4xf32>
    %cst_14 = arith.constant 0.000000e+00 : f32
    %14 = vector.broadcast %cst_14 : f32 to vector<1x4xf32>
    %15 = tpu.iota {dimensions = array<i32: 0>} : vector<288x1xi32>
    %c16_i32 = arith.constant 16 : i32
    %c0_i32_15 = arith.constant 0 : i32
    %16 = arith.cmpi eq, %c16_i32, %c0_i32_15 : i32
    %c1_i32 = arith.constant 1 : i32
    %17 = arith.select %16, %c1_i32, %c16_i32 : i32
    %18 = vector.broadcast %17 : i32 to vector<288x1xi32>
    %19 = arith.remsi %15, %18 : vector<288x1xi32>
    %c0_i32_16 = arith.constant 0 : i32
    %20 = vector.broadcast %c0_i32_16 : i32 to vector<288x1xi32>
    %21 = arith.cmpi ne, %19, %20 : vector<288x1xi32>
    %c0_i32_17 = arith.constant 0 : i32
    %22 = vector.broadcast %c0_i32_17 : i32 to vector<288x1xi32>
    %23 = arith.cmpi slt, %19, %22 : vector<288x1xi32>
    %c0_i32_18 = arith.constant 0 : i32
    %24 = arith.cmpi slt, %17, %c0_i32_18 : i32
    %25 = vector.broadcast %24 : i1 to vector<288x1xi1>
    %26 = vector.broadcast %25 : vector<288x1xi1> to vector<288x1xi1>
    %27 = arith.xori %23, %26 : vector<288x1xi1>
    %28 = arith.andi %27, %21 : vector<288x1xi1>
    %29 = vector.broadcast %17 : i32 to vector<288x1xi32>
    %30 = arith.addi %19, %29 : vector<288x1xi32>
    %31 = arith.select %28, %30, %19 : vector<288x1xi1>, vector<288x1xi32>
    %c0_i32_19 = arith.constant 0 : i32
    %32 = vector.broadcast %c0_i32_19 : i32 to vector<288x1xi32>
    %33 = arith.cmpi ne, %31, %32 : vector<288x1xi32>
    %34 = arith.extui %33 : vector<288x1xi1> to vector<288x1xi32>
    %35 = arith.sitofp %34 : vector<288x1xi32> to vector<288x1xf32>
    %c15_i32 = arith.constant 15 : i32
    %36 = vector.broadcast %c15_i32 : i32 to vector<288x1xi32>
    %37 = arith.cmpi ne, %31, %36 : vector<288x1xi32>
    %38 = arith.extui %37 : vector<288x1xi1> to vector<288x1xi32>
    %39 = arith.sitofp %38 : vector<288x1xi32> to vector<288x1xf32>
    %40 = tpu.concatenate %7, %13, %11 in 0 : vector<16x4xf32>, vector<256x4xf32>, vector<16x4xf32> -> vector<288x4xf32>
    %41 = vector.extract_strided_slice %11 {offsets = [0, 0], sizes = [15, 4], strides = [1, 1]} : vector<16x4xf32> to vector<15x4xf32>
    %42 = tpu.concatenate %14, %7, %13, %41 in 0 : vector<1x4xf32>, vector<16x4xf32>, vector<256x4xf32>, vector<15x4xf32> -> vector<288x4xf32>
    %43 = vector.broadcast %35 : vector<288x1xf32> to vector<288x4xf32>
    %44 = arith.mulf %42, %43 : vector<288x4xf32>
    %45 = vector.extract_strided_slice %7 {offsets = [1, 0], sizes = [15, 4], strides = [1, 1]} : vector<16x4xf32> to vector<15x4xf32>
    %46 = tpu.concatenate %45, %13, %11, %14 in 0 : vector<15x4xf32>, vector<256x4xf32>, vector<16x4xf32>, vector<1x4xf32> -> vector<288x4xf32>
    %47 = vector.broadcast %39 : vector<288x1xf32> to vector<288x4xf32>
    %48 = arith.mulf %46, %47 : vector<288x4xf32>
    %49 = tpu.concatenate %44, %40, %48 in 1 : vector<288x4xf32>, vector<288x4xf32>, vector<288x4xf32> -> vector<288x12xf32>
    %50 = vector.extract_strided_slice %49 {offsets = [0, 0], sizes = [256, 12], strides = [1, 1]} : vector<288x12xf32> to vector<256x12xf32>
    %c0_20 = arith.constant 0 : index
    %c0_21 = arith.constant 0 : index
    %c0_22 = arith.constant 0 : index
    %51 = vector.load %arg5[%c0_20, %c0_21, %c0_22] : memref<3x12x4xf32, #tpu.memory_space<vmem>>, vector<1x12x4xf32>
    %52 = vector.shape_cast %51 : vector<1x12x4xf32> to vector<12x4xf32>
    %cst_23 = arith.constant dense<0.000000e+00> : vector<256x4xf32>
    %53 = tpu.matmul %50, %52, %cst_23 {dimension_numbers = #tpu.dot_dimension_numbers<[1], [0], [0], [1], [0, 0, 1, 1], [], []>} : vector<256x12xf32>, vector<12x4xf32>, vector<256x4xf32> -> vector<256x4xf32>
    %54 = vector.extract_strided_slice %49 {offsets = [16, 0], sizes = [256, 12], strides = [1, 1]} : vector<288x12xf32> to vector<256x12xf32>
    %c1 = arith.constant 1 : index
    %c0_24 = arith.constant 0 : index
    %c0_25 = arith.constant 0 : index
    %55 = vector.load %arg5[%c1, %c0_24, %c0_25] : memref<3x12x4xf32, #tpu.memory_space<vmem>>, vector<1x12x4xf32>
    %56 = vector.shape_cast %55 : vector<1x12x4xf32> to vector<12x4xf32>
    %cst_26 = arith.constant dense<0.000000e+00> : vector<256x4xf32>
    %57 = tpu.matmul %54, %56, %cst_26 {dimension_numbers = #tpu.dot_dimension_numbers<[1], [0], [0], [1], [0, 0, 1, 1], [], []>} : vector<256x12xf32>, vector<12x4xf32>, vector<256x4xf32> -> vector<256x4xf32>
    %58 = arith.addf %53, %57 : vector<256x4xf32>
    %59 = vector.extract_strided_slice %49 {offsets = [32, 0], sizes = [256, 12], strides = [1, 1]} : vector<288x12xf32> to vector<256x12xf32>
    %c2 = arith.constant 2 : index
    %c0_27 = arith.constant 0 : index
    %c0_28 = arith.constant 0 : index
    %60 = vector.load %arg5[%c2, %c0_27, %c0_28] : memref<3x12x4xf32, #tpu.memory_space<vmem>>, vector<1x12x4xf32>
    %61 = vector.shape_cast %60 : vector<1x12x4xf32> to vector<12x4xf32>
    %cst_29 = arith.constant dense<0.000000e+00> : vector<256x4xf32>
    %62 = tpu.matmul %59, %61, %cst_29 {dimension_numbers = #tpu.dot_dimension_numbers<[1], [0], [0], [1], [0, 0, 1, 1], [], []>} : vector<256x12xf32>, vector<12x4xf32>, vector<256x4xf32> -> vector<256x4xf32>
    %63 = arith.addf %58, %62 : vector<256x4xf32>
    %c0_30 = arith.constant 0 : index
    %c0_31 = arith.constant 0 : index
    %64 = vector.load %arg6[%c0_30, %c0_31] : memref<1x4xf32, #tpu.memory_space<vmem>>, vector<1x4xf32>
    %65 = vector.broadcast %64 : vector<1x4xf32> to vector<256x4xf32>
    %66 = arith.addf %63, %65 : vector<256x4xf32>
    %cst_32 = arith.constant 0.000000e+00 : f32
    %67 = vector.broadcast %cst_32 : f32 to vector<256x4xf32>
    %68 = arith.maximumf %66, %67 : vector<256x4xf32>
    %c0_33 = arith.constant 0 : index
    %c0_34 = arith.constant 0 : index
    %69 = vector.load %arg7[%c0_33, %c0_34] : memref<4x128xf32, #tpu.memory_space<vmem>>, vector<4x128xf32>
    %cst_35 = arith.constant dense<0.000000e+00> : vector<256x128xf32>
    %70 = tpu.matmul %68, %69, %cst_35 {dimension_numbers = #tpu.dot_dimension_numbers<[1], [0], [0], [1], [0, 0, 1, 1], [], []>} : vector<256x4xf32>, vector<4x128xf32>, vector<256x128xf32> -> vector<256x128xf32>
    %c0_36 = arith.constant 0 : index
    %c0_37 = arith.constant 0 : index
    %71 = vector.load %arg8[%c0_36, %c0_37] : memref<1x128xf32, #tpu.memory_space<vmem>>, vector<1x128xf32>
    %72 = vector.broadcast %71 : vector<1x128xf32> to vector<256x128xf32>
    %73 = arith.addf %70, %72 : vector<256x128xf32>
    %c0_38 = arith.constant 0 : index
    %c0_39 = arith.constant 0 : index
    %c0_40 = arith.constant 0 : index
    %74 = vector.load %arg9[%c0_38, %c0_39, %c0_40] : memref<1x256x128xf32, #tpu.memory_space<vmem>>, vector<1x256x128xf32>
    %75 = vector.shape_cast %74 : vector<1x256x128xf32> to vector<256x128xf32>
    %76 = vector.shape_cast %73 : vector<256x128xf32> to vector<1x256x128xf32>
    tpu.vector_store %arg9[%c0_38, %c0_39, %c0_40], %76 {strides = array<i32>} : memref<1x256x128xf32, #tpu.memory_space<vmem>>, vector<1x256x128xf32>,
    return
  }
  func.func @transform_0(%arg0: i32, %arg1: i32) -> (i32, i32, i32) {
    %c0_i32 = arith.constant 0 : i32
    %c0_i32_0 = arith.constant 0 : i32
    return %arg0, %arg1, %c0_i32 : i32, i32, i32
  }
  func.func @transform_1(%arg0: i32, %arg1: i32) -> (i32, i32, i32, i32) {
    %c16_i32 = arith.constant 16 : i32
    %0 = arith.muli %arg1, %c16_i32 : i32
    %c1_i32 = arith.constant 1 : i32
    %1 = arith.subi %0, %c1_i32 : i32
    %c0_i32 = arith.constant 0 : i32
    %2 = arith.maxsi %1, %c0_i32 : i32
    %c0_i32_0 = arith.constant 0 : i32
    %c0_i32_1 = arith.constant 0 : i32
    %c0_i32_2 = arith.constant 0 : i32
    return %arg0, %2, %c0_i32_0, %c0_i32_1 : i32, i32, i32, i32
  }
  func.func @transform_2(%arg0: i32, %arg1: i32) -> (i32, i32, i32, i32) {
    %c16_i32 = arith.constant 16 : i32
    %0 = arith.muli %arg1, %c16_i32 : i32
    %c16_i32_0 = arith.constant 16 : i32
    %1 = arith.addi %0, %c16_i32_0 : i32
    %c15_i32 = arith.constant 15 : i32
    %2 = arith.minsi %1, %c15_i32 : i32
    %c0_i32 = arith.constant 0 : i32
    %c0_i32_1 = arith.constant 0 : i32
    %c0_i32_2 = arith.constant 0 : i32
    return %arg0, %2, %c0_i32, %c0_i32_1 : i32, i32, i32, i32
  }
  func.func @transform_3(%arg0: i32, %arg1: i32) -> (i32, i32, i32) {
    %c0_i32 = arith.constant 0 : i32
    %c0_i32_0 = arith.constant 0 : i32
    %c0_i32_1 = arith.constant 0 : i32
    %c0_i32_2 = arith.constant 0 : i32
    return %c0_i32, %c0_i32_0, %c0_i32_1 : i32, i32, i32
  }
  func.func @transform_4(%arg0: i32, %arg1: i32) -> (i32, i32) {
    %c0_i32 = arith.constant 0 : i32
    %c0_i32_0 = arith.constant 0 : i32
    %c0_i32_1 = arith.constant 0 : i32
    return %c0_i32, %c0_i32_0 : i32, i32
  }
  func.func @transform_5(%arg0: i32, %arg1: i32) -> (i32, i32) {
    %c0_i32 = arith.constant 0 : i32
    %c0_i32_0 = arith.constant 0 : i32
    %c0_i32_1 = arith.constant 0 : i32
    return %c0_i32, %c0_i32_0 : i32, i32
  }
  func.func @transform_6(%arg0: i32, %arg1: i32) -> (i32, i32) {
    %c0_i32 = arith.constant 0 : i32
    %c0_i32_0 = arith.constant 0 : i32
    %c0_i32_1 = arith.constant 0 : i32
    return %c0_i32, %c0_i32_0 : i32, i32
  }
  func.func @transform_7(%arg0: i32, %arg1: i32) -> (i32, i32, i32) {
    %c0_i32 = arith.constant 0 : i32
    %c0_i32_0 = arith.constant 0 : i32
    return %arg0, %arg1, %c0_i32 : i32, i32, i32
  }
}

</mosaic_0001>

<llo_original>
// kernel: tpu_custom_call.1
$region0: #{tpu_custom_call.1}
  #allocation0 [shape = 'u32[]', space=smem, size = 0x4, offset = 0x4, fixed_abs, tag = 'smem constant byte address 0x4 - core index']
  #allocation1 [shape = 'u32[144,128]{1,0:T(1,128)}', space=vmem, size = 0x12000, scoped, tag = 'internal scratch']
  %s0 = inlined_call_operand.vmem [shape: f32[2,256,4], index: 0, kind: input, shape index: {}]
  %s1 = inlined_call_operand.vmem [shape: f32[2,16,16,4], index: 1, kind: input, shape index: {}]
  %s2 = inlined_call_operand.vmem [shape: f32[2,16,16,4], index: 2, kind: input, shape index: {}]
  %s3 = inlined_call_operand.vmem [shape: f32[3,12,4], index: 3, kind: input, shape index: {}]
  %s4 = inlined_call_operand.vmem [shape: f32[1,4], index: 4, kind: input, shape index: {}]
  %s5 = inlined_call_operand.vmem [shape: f32[4,128], index: 5, kind: input, shape index: {}]
  %s6 = inlined_call_operand.vmem [shape: f32[1,128], index: 6, kind: input, shape index: {}]
  %s7 = inlined_call_operand.hbm [shape: f32[2,256,128], index: 7, kind: output, shape index: {}]
  %s8 = sld [smem:[#allocation0]]
  $region61: #{tpu_custom_call.1} parent=0
    _
  %s10 = ssub.s32 1, %s8
  %s11 = scalar_select 0, %s10, %s8
  $region1: #{tpu_custom_call.1} parent=0
    #allocation2 [shape = 'u8[262144]{0}', space=vmem, size = 0x40000, scoped, tag = 'output window, operand 0']
    #allocation3 [shape = 's32[2]{0}', space=sflag, size = 0x8, scoped, tag = 'scoped memory for tpu_custom_call.1']
    %12 = vsyncpa [#allocation3], 0
    %s13 = scalar_lea.sflag [#allocation3], 1
    %14 = vsyncpa %s13, 0
    loop: start=0, step=1, limit=4
    $region2: #{tpu_custom_call.1} parent=1 // loop_pre_header
      _
    $region3: #{tpu_custom_call.1} parent=1 // loop_header
      %s16 = sphi 0, %s20
      %p17 = scmp.ge.s32.totalorder %s16, 4
      %s23 = sphi 0, %s35
      %s24 = sphi 0, %s31
      %s25 = sphi 0, %s23
      %s26 = sphi 0, %s24
      %s27 = sphi 0, %s25
      %s28 = sphi 0, %s26
      %s40 = sphi 0, %s42
      %s43 = sphi 0, %s40
      %s44 = sphi 0, %s43
      %s60 = sphi 0, %s44
      %s76 = sphi 0, %s78
      %s79 = sphi 0, %s76
      %s80 = sphi 0, %s79
      %s96 = sphi 0, %s80
      %s112 = sphi 0, %s114
      %s115 = sphi 0, %s112
      %s116 = sphi 0, %s115
      %s132 = sphi 0, %s116
      %s136 = sphi 0, %s136
      %s138 = sphi 0, %s136
      %s139 = sphi 0, %s138
      %s153 = sphi 0, %s139
      %s157 = sphi 0, %s157
      %s159 = sphi 0, %s157
      %s160 = sphi 0, %s159
      %s174 = sphi 0, %s160
      %s178 = sphi 0, %s178
      %s180 = sphi 0, %s178
      %s181 = sphi 0, %s180
      %s195 = sphi 0, %s181
      %s199 = sphi 0, %s199
      %s201 = sphi 0, %s199
      %s202 = sphi 0, %s201
      %s216 = sphi 0, %s202
      %s224 = sphi 0, %s226
      %s227 = sphi 0, %s224
      %s228 = sphi 0, %s227
      %s244 = sphi 0, %s228
    $region4: #{tpu_custom_call.1} parent=1 // loop_header_branch
      %19 = sbr.rel (%p17) target = $region8
    $region5: #{tpu_custom_call.1} parent=1 // loop_body
      %s21 = ssub.s32 %s16, 1
      %s22 = ssub.s32 %s16, 2
      %s29 = sadd.s32 1, %s24
      %p30 = scmp.ge.s32.totalorder %s29, 1
      %s31 = scalar_select %p30, 0, %s29
      %s32 = sadd.s32 1, %s23
      %s33 = scalar_select %p30, %s32, %s23
      %p34 = scmp.ge.s32.totalorder %s33, 2
      %s35 = scalar_select %p34, 0, %s33
      %s36 = ssub.s32 %s23, %s35
      %s37 = ssub.s32 %s24, %s31
      %s38 = sor.u32 %s36, %s37
      %p39 = scmp.eq.s32.totalorder %s38, 0
      %s41 = sadd.s32 %s40, 1
      %s42 = scalar_select %p39, %s40, %s41
      %p45 = pneg %p39
      %p46 = scmp.eq.s32.totalorder %s16, 1
      %p47 = por %p45, %p46
      %p48 = scmp.ne.s32.totalorder %s40, %s43
      %p49 = scmp.eq.s32.totalorder %s16, 0
      %p50 = por %p48, %p49
      %p51 = scmp.ne.s32.totalorder %s40, %s43
      %p52 = scmp.eq.s32.totalorder %s21, 1
      %p53 = por %p51, %p52
      %p54 = scmp.ne.s32.totalorder %s43, %s44
      %p55 = scmp.eq.s32.totalorder %s21, 0
      %p56 = por %p54, %p55
      %p57 = scmp.ne.s32.totalorder %s43, %s44
      %p58 = scmp.eq.s32.totalorder %s22, 1
      %p59 = por %p57, %p58
      %p61 = scmp.ne.s32.totalorder %s44, %s60
      %p62 = scmp.eq.s32.totalorder %s22, 0
      %p63 = por %p61, %p62
      %s64 = smul.u32 %s24, 16
      %s65 = ssub.s32 %s64, 1
      %p66 = scmp.gt.s32.totalorder %s65, 0
      %s67 = scalar_select %p66, %s65, 0
      %s68 = smul.u32 %s31, 16
      %s69 = ssub.s32 %s68, 1
      %p70 = scmp.gt.s32.totalorder %s69, 0
      %s71 = scalar_select %p70, %s69, 0
      %s72 = ssub.s32 %s23, %s35
      %s73 = ssub.s32 %s67, %s71
      %s74 = sor.u32 %s72, %s73
      %p75 = scmp.eq.s32.totalorder %s74, 0
      %s77 = sadd.s32 %s76, 1
      %s78 = scalar_select %p75, %s76, %s77
      %p81 = pneg %p75
      %p82 = scmp.eq.s32.totalorder %s16, 1
      %p83 = por %p81, %p82
      %p84 = scmp.ne.s32.totalorder %s76, %s79
      %p85 = scmp.eq.s32.totalorder %s16, 0
      %p86 = por %p84, %p85
      %p87 = scmp.ne.s32.totalorder %s76, %s79
      %p88 = scmp.eq.s32.totalorder %s21, 1
      %p89 = por %p87, %p88
      %p90 = scmp.ne.s32.totalorder %s79, %s80
      %p91 = scmp.eq.s32.totalorder %s21, 0
      %p92 = por %p90, %p91
      %p93 = scmp.ne.s32.totalorder %s79, %s80
      %p94 = scmp.eq.s32.totalorder %s22, 1
      %p95 = por %p93, %p94
      %p97 = scmp.ne.s32.totalorder %s80, %s96
      %p98 = scmp.eq.s32.totalorder %s22, 0
      %p99 = por %p97, %p98
      %s100 = smul.u32 %s24, 16
      %s101 = sadd.s32 %s100, 16
      %p102 = scmp.lt.s32.totalorder %s101, 15
      %s103 = scalar_select %p102, %s101, 15
      %s104 = smul.u32 %s31, 16
      %s105 = sadd.s32 %s104, 16
      %p106 = scmp.lt.s32.totalorder %s105, 15
      %s107 = scalar_select %p106, %s105, 15
      %s108 = ssub.s32 %s23, %s35
      %s109 = ssub.s32 %s103, %s107
      %s110 = sor.u32 %s108, %s109
      %p111 = scmp.eq.s32.totalorder %s110, 0
      %s113 = sadd.s32 %s112, 1
      %s114 = scalar_select %p111, %s112, %s113
      %p117 = pneg %p111
      %p118 = scmp.eq.s32.totalorder %s16, 1
      %p119 = por %p117, %p118
      %p120 = scmp.ne.s32.totalorder %s112, %s115
      %p121 = scmp.eq.s32.totalorder %s16, 0
      %p122 = por %p120, %p121
      %p123 = scmp.ne.s32.totalorder %s112, %s115
      %p124 = scmp.eq.s32.totalorder %s21, 1
      %p125 = por %p123, %p124
      %p126 = scmp.ne.s32.totalorder %s115, %s116
      %p127 = scmp.eq.s32.totalorder %s21, 0
      %p128 = por %p126, %p127
      %p129 = scmp.ne.s32.totalorder %s115, %s116
      %p130 = scmp.eq.s32.totalorder %s22, 1
      %p131 = por %p129, %p130
      %p133 = scmp.ne.s32.totalorder %s116, %s132
      %p134 = scmp.eq.s32.totalorder %s22, 0
      %p135 = por %p133, %p134
      %s137 = sadd.s32 %s136, 1
      %p140 = scmp.eq.s32.totalorder %s16, 1
      %p141 = scmp.ne.s32.totalorder %s136, %s138
      %p142 = scmp.eq.s32.totalorder %s16, 0
      %p143 = por %p141, %p142
      %p144 = scmp.ne.s32.totalorder %s136, %s138
      %p145 = scmp.eq.s32.totalorder %s21, 1
      %p146 = por %p144, %p145
      %p147 = scmp.ne.s32.totalorder %s138, %s139
      %p148 = scmp.eq.s32.totalorder %s21, 0
      %p149 = por %p147, %p148
      %p150 = scmp.ne.s32.totalorder %s138, %s139
      %p151 = scmp.eq.s32.totalorder %s22, 1
      %p152 = por %p150, %p151
      %p154 = scmp.ne.s32.totalorder %s139, %s153
      %p155 = scmp.eq.s32.totalorder %s22, 0
      %p156 = por %p154, %p155
      %s158 = sadd.s32 %s157, 1
      %p161 = scmp.eq.s32.totalorder %s16, 1
      %p162 = scmp.ne.s32.totalorder %s157, %s159
      %p163 = scmp.eq.s32.totalorder %s16, 0
      %p164 = por %p162, %p163
      %p165 = scmp.ne.s32.totalorder %s157, %s159
      %p166 = scmp.eq.s32.totalorder %s21, 1
      %p167 = por %p165, %p166
      %p168 = scmp.ne.s32.totalorder %s159, %s160
      %p169 = scmp.eq.s32.totalorder %s21, 0
      %p170 = por %p168, %p169
      %p171 = scmp.ne.s32.totalorder %s159, %s160
      %p172 = scmp.eq.s32.totalorder %s22, 1
      %p173 = por %p171, %p172
      %p175 = scmp.ne.s32.totalorder %s160, %s174
      %p176 = scmp.eq.s32.totalorder %s22, 0
      %p177 = por %p175, %p176
      %s179 = sadd.s32 %s178, 1
      %p182 = scmp.eq.s32.totalorder %s16, 1
      %p183 = scmp.ne.s32.totalorder %s178, %s180
      %p184 = scmp.eq.s32.totalorder %s16, 0
      %p185 = por %p183, %p184
      %p186 = scmp.ne.s32.totalorder %s178, %s180
      %p187 = scmp.eq.s32.totalorder %s21, 1
      %p188 = por %p186, %p187
      %p189 = scmp.ne.s32.totalorder %s180, %s181
      %p190 = scmp.eq.s32.totalorder %s21, 0
      %p191 = por %p189, %p190
      %p192 = scmp.ne.s32.totalorder %s180, %s181
      %p193 = scmp.eq.s32.totalorder %s22, 1
      %p194 = por %p192, %p193
      %p196 = scmp.ne.s32.totalorder %s181, %s195
      %p197 = scmp.eq.s32.totalorder %s22, 0
      %p198 = por %p196, %p197
      %s200 = sadd.s32 %s199, 1
      %p203 = scmp.eq.s32.totalorder %s16, 1
      %p204 = scmp.ne.s32.totalorder %s199, %s201
      %p205 = scmp.eq.s32.totalorder %s16, 0
      %p206 = por %p204, %p205
      %p207 = scmp.ne.s32.totalorder %s199, %s201
      %p208 = scmp.eq.s32.totalorder %s21, 1
      %p209 = por %p207, %p208
      %p210 = scmp.ne.s32.totalorder %s201, %s202
      %p211 = scmp.eq.s32.totalorder %s21, 0
      %p212 = por %p210, %p211
      %p213 = scmp.ne.s32.totalorder %s201, %s202
      %p214 = scmp.eq.s32.totalorder %s22, 1
      %p215 = por %p213, %p214
      %p217 = scmp.ne.s32.totalorder %s202, %s216
      %p218 = scmp.eq.s32.totalorder %s22, 0
      %p219 = por %p217, %p218
      %s220 = ssub.s32 %s23, %s35
      %s221 = ssub.s32 %s24, %s31
      %s222 = sor.u32 %s220, %s221
      %p223 = scmp.eq.s32.totalorder %s222, 0
      %s225 = sadd.s32 %s224, 1
      %s226 = scalar_select %p223, %s224, %s225
      %p229 = pneg %p223
      %p230 = scmp.eq.s32.totalorder %s16, 1
      %p231 = por %p229, %p230
      %p232 = scmp.ne.s32.totalorder %s224, %s227
      %p233 = scmp.eq.s32.totalorder %s16, 0
      %p234 = por %p232, %p233
      %p235 = scmp.ne.s32.totalorder %s224, %s227
      %p236 = scmp.eq.s32.totalorder %s21, 1
      %p237 = por %p235, %p236
      %p238 = scmp.ne.s32.totalorder %s227, %s228
      %p239 = scmp.eq.s32.totalorder %s21, 0
      %p240 = por %p238, %p239
      %p241 = scmp.ne.s32.totalorder %s227, %s228
      %p242 = scmp.eq.s32.totalorder %s22, 1
      %p243 = por %p241, %p242
      %p245 = scmp.ne.s32.totalorder %s228, %s244
      %p246 = scmp.eq.s32.totalorder %s22, 0
      %p247 = por %p245, %p246
      %p248 = scmp.le.s32.totalorder 1, %s16
      %p249 = scmp.lt.s32.totalorder %s16, 3
      %p250 = pnand %p248, %p249
      %p251 = pneg %p250
      // Predicated region
      $region9: #{tpu_custom_call.1} parent=5 // pred_check
        _
      $region10: #{tpu_custom_call.1} parent=5 // pred_check_branch
        %253 = sbr.rel (%p250) target = $region12
      $region11: #{tpu_custom_call.1} parent=5 // pred_region
        %s254 = ssub.s32 %s16, 1
        // Predicated region
        $region13: #{tpu_custom_call.1} parent=11 // pred_check
          %p255 = pneg %p149
        $region14: #{tpu_custom_call.1} parent=11 // pred_check_branch
          %257 = sbr.rel (%p255) target = $region16
        $region15: #{tpu_custom_call.1} parent=11 // pred_region
          _
        $region16: #{tpu_custom_call.1} parent=11 // pred_fallthru
          _
        // Predicated region
        $region17: #{tpu_custom_call.1} parent=11 // pred_check
          %p258 = pneg %p170
        $region18: #{tpu_custom_call.1} parent=11 // pred_check_branch
          %260 = sbr.rel (%p258) target = $region20
        $region19: #{tpu_custom_call.1} parent=11 // pred_region
          _
        $region20: #{tpu_custom_call.1} parent=11 // pred_fallthru
          _
        // Predicated region
        $region21: #{tpu_custom_call.1} parent=11 // pred_check
          %p261 = pneg %p191
        $region22: #{tpu_custom_call.1} parent=11 // pred_check_branch
          %263 = sbr.rel (%p261) target = $region24
        $region23: #{tpu_custom_call.1} parent=11 // pred_region
          _
        $region24: #{tpu_custom_call.1} parent=11 // pred_fallthru
          _
        // Predicated region
        $region25: #{tpu_custom_call.1} parent=11 // pred_check
          %p264 = pneg %p212
        $region26: #{tpu_custom_call.1} parent=11 // pred_check_branch
          %266 = sbr.rel (%p264) target = $region28
        $region27: #{tpu_custom_call.1} parent=11 // pred_region
          _
        $region28: #{tpu_custom_call.1} parent=11 // pred_fallthru
          _
      $region12: #{tpu_custom_call.1} parent=5 // pred_fallthru
        _
      %p267 = scmp.lt.s32.totalorder %s16, 2
      // Predicated region
      $region29: #{tpu_custom_call.1} parent=5 // pred_check
        %p268 = pneg %p267
      $region30: #{tpu_custom_call.1} parent=5 // pred_check_branch
        %270 = sbr.rel (%p268) target = $region32
      $region31: #{tpu_custom_call.1} parent=5 // pred_region
        // Predicated region
        $region33: #{tpu_custom_call.1} parent=31 // pred_check
          %p271 = pneg %p50
        $region34: #{tpu_custom_call.1} parent=31 // pred_check_branch
          %273 = sbr.rel (%p271) target = $region36
        $region35: #{tpu_custom_call.1} parent=31 // pred_region
          %s274 = smul.u32 32, %s24
          %p275 = scmp.lt.s32.totalorder %s23, 1
          %s276 = scalar_select %p275, %s23, 1
          %p277 = scmp.lt.s32.totalorder %s274, 31
          %s278 = scalar_select %p277, %s274, 31
          %s279 = smul.addr %s276, 32
          %s280 = sadd.s32 %s278, %s279
          %s281 = smul.addr %s280, 8
          %s282 = scalar_lea.vmem %s0, %s281
          %s283 = smul.u32 32, %s24
        $region36: #{tpu_custom_call.1} parent=31 // pred_fallthru
          _
        // Predicated region
        $region37: #{tpu_custom_call.1} parent=31 // pred_check
          %p284 = pneg %p86
        $region38: #{tpu_custom_call.1} parent=31 // pred_check_branch
          %286 = sbr.rel (%p284) target = $region40
        $region39: #{tpu_custom_call.1} parent=31 // pred_region
          %s287 = smul.u32 %s24, 16
          %s288 = ssub.s32 %s287, 1
          %p289 = scmp.gt.s32.totalorder %s288, 0
          %s290 = scalar_select %p289, %s288, 0
          %p291 = scmp.lt.s32.totalorder %s23, 1
          %s292 = scalar_select %p291, %s23, 1
          %p293 = scmp.lt.s32.totalorder %s290, 15
          %s294 = scalar_select %p293, %s290, 15
          %s295 = smul.addr %s294, 2
          %s296 = smul.addr %s292, 32
          %s297 = sadd.s32 %s295, %s296
          %s298 = smul.addr %s297, 8
          %s299 = scalar_lea.vmem %s1, %s298
          %s300 = smul.u32 %s24, 16
          %s301 = ssub.s32 %s300, 1
          %p302 = scmp.gt.s32.totalorder %s301, 0
          %s303 = scalar_select %p302, %s301, 0
        $region40: #{tpu_custom_call.1} parent=31 // pred_fallthru
          _
        // Predicated region
        $region41: #{tpu_custom_call.1} parent=31 // pred_check
          %p304 = pneg %p122
        $region42: #{tpu_custom_call.1} parent=31 // pred_check_branch
          %306 = sbr.rel (%p304) target = $region44
        $region43: #{tpu_custom_call.1} parent=31 // pred_region
          %s307 = smul.u32 %s24, 16
          %s308 = sadd.s32 %s307, 16
          %p309 = scmp.lt.s32.totalorder %s308, 15
          %s310 = scalar_select %p309, %s308, 15
          %p311 = scmp.lt.s32.totalorder %s23, 1
          %s312 = scalar_select %p311, %s23, 1
          %p313 = scmp.lt.s32.totalorder %s310, 15
          %s314 = scalar_select %p313, %s310, 15
          %s315 = smul.addr %s314, 2
          %s316 = smul.addr %s312, 32
          %s317 = sadd.s32 %s315, %s316
          %s318 = smul.addr %s317, 8
          %s319 = scalar_lea.vmem %s2, %s318
          %s320 = smul.u32 %s24, 16
          %s321 = sadd.s32 %s320, 16
          %p322 = scmp.lt.s32.totalorder %s321, 15
          %s323 = scalar_select %p322, %s321, 15
        $region44: #{tpu_custom_call.1} parent=31 // pred_fallthru
          _
      $region32: #{tpu_custom_call.1} parent=5 // pred_fallthru
        _
      %p324 = scmp.le.s32.totalorder 1, %s16
      %p325 = scmp.lt.s32.totalorder %s16, 3
      %p326 = pnand %p324, %p325
      %p327 = pneg %p326
      // Predicated region
      $region45: #{tpu_custom_call.1} parent=5 // pred_check
        _
      $region46: #{tpu_custom_call.1} parent=5 // pred_check_branch
        %329 = sbr.rel (%p326) target = $region48
      $region47: #{tpu_custom_call.1} parent=5 // pred_region
        %s330 = ssub.s32 %s16, 1
        %s331 = smul.u32 32, %s26
        %p332 = scmp.lt.s32.totalorder %s25, 1
        %s333 = scalar_select %p332, %s25, 1
        %p334 = scmp.lt.s32.totalorder %s331, 31
        %s335 = scalar_select %p334, %s331, 31
        %s336 = smul.addr %s333, 32
        %s337 = sadd.s32 %s335, %s336
        %s338 = smul.addr %s337, 8
        %s339 = scalar_lea.vmem %s0, %s338
        %p340 = pneg %p56
        %p341 = pneg %p53
        %s342 = smul.u32 %s26, 16
        %s343 = ssub.s32 %s342, 1
        %p344 = scmp.gt.s32.totalorder %s343, 0
        %s345 = scalar_select %p344, %s343, 0
        %p346 = scmp.lt.s32.totalorder %s25, 1
        %s347 = scalar_select %p346, %s25, 1
        %p348 = scmp.lt.s32.totalorder %s345, 15
        %s349 = scalar_select %p348, %s345, 15
        %s350 = smul.addr %s349, 2
        %s351 = smul.addr %s347, 32
        %s352 = sadd.s32 %s350, %s351
        %s353 = smul.addr %s352, 8
        %s354 = scalar_lea.vmem %s1, %s353
        %p355 = pneg %p92
        %p356 = pneg %p89
        %s357 = smul.u32 %s26, 16
        %s358 = sadd.s32 %s357, 16
        %p359 = scmp.lt.s32.totalorder %s358, 15
        %s360 = scalar_select %p359, %s358, 15
        %p361 = scmp.lt.s32.totalorder %s25, 1
        %s362 = scalar_select %p361, %s25, 1
        %p363 = scmp.lt.s32.totalorder %s360, 15
        %s364 = scalar_select %p363, %s360, 15
        %s365 = smul.addr %s364, 2
        %s366 = smul.addr %s362, 32
        %s367 = sadd.s32 %s365, %s366
        %s368 = smul.addr %s367, 8
        %s369 = scalar_lea.vmem %s2, %s368
        %p370 = pneg %p128
        %p371 = pneg %p125
        %p372 = pneg %p149
        %p373 = pneg %p146
        %p374 = pneg %p170
        %p375 = pneg %p167
        %p376 = pneg %p191
        %p377 = pneg %p188
        %p378 = pneg %p212
        %p379 = pneg %p209
        %p380 = pneg %p240
        %p381 = pneg %p237
        %s382 = sand.u32 %s227, 1
        %s383 = scalar_lea.sflag [#allocation3], %s382
        %s384 = sand.u32 %s227, 1
        %s385 = smul.addr %s384, 256
        %s386 = scalar_lea.vmem [#allocation2], %s385
        %s387 = smul.u32 32, %s26
        %p388 = scmp.lt.s32.totalorder %s25, 1
        %s389 = scalar_select %p388, %s25, 1
        %p390 = scmp.lt.s32.totalorder %s387, 31
        %s391 = scalar_select %p390, %s387, 31
        %s392 = smul.addr %s389, 32
        %s393 = sadd.s32 %s391, %s392
        %s394 = smul.addr %s393, 8
        %s395 = scalar_lea.vmem %s0, %s394
        %s396 = smul.u32 32, %s26
        %s397 = smul.u32 %s26, 16
        %s398 = ssub.s32 %s397, 1
        %p399 = scmp.gt.s32.totalorder %s398, 0
        %s400 = scalar_select %p399, %s398, 0
        %p401 = scmp.lt.s32.totalorder %s25, 1
        %s402 = scalar_select %p401, %s25, 1
        %p403 = scmp.lt.s32.totalorder %s400, 15
        %s404 = scalar_select %p403, %s400, 15
        %s405 = smul.addr %s404, 2
        %s406 = smul.addr %s402, 32
        %s407 = sadd.s32 %s405, %s406
        %s408 = smul.addr %s407, 8
        %s409 = scalar_lea.vmem %s1, %s408
        %s410 = smul.u32 %s26, 16
        %s411 = ssub.s32 %s410, 1
        %p412 = scmp.gt.s32.totalorder %s411, 0
        %s413 = scalar_select %p412, %s411, 0
        %s414 = smul.u32 %s26, 16
        %s415 = sadd.s32 %s414, 16
        %p416 = scmp.lt.s32.totalorder %s415, 15
        %s417 = scalar_select %p416, %s415, 15
        %p418 = scmp.lt.s32.totalorder %s25, 1
        %s419 = scalar_select %p418, %s25, 1
        %p420 = scmp.lt.s32.totalorder %s417, 15
        %s421 = scalar_select %p420, %s417, 15
        %s422 = smul.addr %s421, 2
        %s423 = smul.addr %s419, 32
        %s424 = sadd.s32 %s422, %s423
        %s425 = smul.addr %s424, 8
        %s426 = scalar_lea.vmem %s2, %s425
        %s427 = smul.u32 %s26, 16
        %s428 = sadd.s32 %s427, 16
        %p429 = scmp.lt.s32.totalorder %s428, 15
        %s430 = scalar_select %p429, %s428, 15
        %s431 = smul.u32 32, %s26
        %p432 = scmp.eq.s32.totalorder %s26, 0
        %s433 = scalar_select %p432, 0.0, 1.0
        %v434 = vld [vmem:[%s409] sm:$0xff]
        %v435 = vld [vmem:[%s409 + $0x8] sm:$0xff]
        %v436 = vstv %s433
        %v437 = vmul.f32 %v434, %v436
        %v438 = vmul.f32 %v435, %v436
        %v439 = vld [vmem:[%s426] sm:$0xff]
        %v440 = vld [vmem:[%s426 + $0x8] sm:$0xff]
        %v441 = vmul.f32 %v439, %v436
        %v442 = vmul.f32 %v440, %v436
        %v443 = vld [vmem:[%s395] sm:$0xff]
        %v444 = vld [vmem:[%s395 + $0x8] sm:$0xff]
        %v445 = vld [vmem:[%s395 + $0x10] sm:$0xff]
        %v446 = vld [vmem:[%s395 + $0x18] sm:$0xff]
        %v447 = vld [vmem:[%s395 + $0x20] sm:$0xff]
        %v448 = vld [vmem:[%s395 + $0x28] sm:$0xff]
        %v449 = vld [vmem:[%s395 + $0x30] sm:$0xff]
        %v450 = vld [vmem:[%s395 + $0x38] sm:$0xff]
        %v451 = vld [vmem:[%s395 + $0x40] sm:$0xff]
        %v452 = vld [vmem:[%s395 + $0x48] sm:$0xff]
        %v453 = vld [vmem:[%s395 + $0x50] sm:$0xff]
        %v454 = vld [vmem:[%s395 + $0x58] sm:$0xff]
        %v455 = vld [vmem:[%s395 + $0x60] sm:$0xff]
        %v456 = vld [vmem:[%s395 + $0x68] sm:$0xff]
        %v457 = vld [vmem:[%s395 + $0x70] sm:$0xff]
        %v458 = vld [vmem:[%s395 + $0x78] sm:$0xff]
        %v459 = vld [vmem:[%s395 + $0x80] sm:$0xff]
        %v460 = vld [vmem:[%s395 + $0x88] sm:$0xff]
        %v461 = vld [vmem:[%s395 + $0x90] sm:$0xff]
        %v462 = vld [vmem:[%s395 + $0x98] sm:$0xff]
        %v463 = vld [vmem:[%s395 + $0xa0] sm:$0xff]
        %v464 = vld [vmem:[%s395 + $0xa8] sm:$0xff]
        %v465 = vld [vmem:[%s395 + $0xb0] sm:$0xff]
        %v466 = vld [vmem:[%s395 + $0xb8] sm:$0xff]
        %v467 = vld [vmem:[%s395 + $0xc0] sm:$0xff]
        %v468 = vld [vmem:[%s395 + $0xc8] sm:$0xff]
        %v469 = vld [vmem:[%s395 + $0xd0] sm:$0xff]
        %v470 = vld [vmem:[%s395 + $0xd8] sm:$0xff]
        %v471 = vld [vmem:[%s395 + $0xe0] sm:$0xff]
        %v472 = vld [vmem:[%s395 + $0xe8] sm:$0xff]
        %v473 = vld [vmem:[%s395 + $0xf0] sm:$0xff]
        %v474 = vld [vmem:[%s395 + $0xf8] sm:$0xff]
        %v475 = vlaneseq
        %v476 = vshrl.u32 %v475, 7
        %v477 = vadd.s32 %v476, 8
        %v478 = vadd.s32 %v476, 16
        %v479 = vadd.s32 %v476, 24
        %v480 = vadd.s32 %v476, 32
        %v481 = vadd.s32 %v476, 40
        %v482 = vadd.s32 %v476, 48
        %v483 = vadd.s32 %v476, 56
        %v484 = vadd.s32 %v476, 64
        %v485 = vadd.s32 %v476, 72
        %v486 = vadd.s32 %v476, 80
        %v487 = vadd.s32 %v476, 88
        %v488 = vadd.s32 %v476, 96
        %v489 = vadd.s32 %v476, 104
        %v490 = vadd.s32 %v476, 112
        %v491 = vadd.s32 %v476, 120
        %v492 = vadd.s32 %v476, 128
        %v493 = vadd.s32 %v476, 136
        %v494 = vadd.s32 %v476, 144
        %v495 = vadd.s32 %v476, 152
        %v496 = vadd.s32 %v476, 160
        %v497 = vadd.s32 %v476, 168
        %v498 = vadd.s32 %v476, 176
        %v499 = vadd.s32 %v476, 184
        %v500 = vadd.s32 %v476, 192
        %v501 = vadd.s32 %v476, 200
        %v502 = vadd.s32 %v476, 208
        %v503 = vadd.s32 %v476, 216
        %v504 = vadd.s32 %v476, 224
        %v505 = vadd.s32 %v476, 232
        %v506 = vadd.s32 %v476, 240
        %v507 = vadd.s32 %v476, 248
        %v508 = vadd.s32 %v476, 256
        %v509 = vadd.s32 %v476, 264
        %v510 = vadd.s32 %v476, 272
        %v511 = vadd.s32 %v476, 280
        %vm512 = vcmp.lt.s32.totalorder %v476, 0
        %v513 = vsub.s32 0, %v476
        %v514 = vsel %vm512, %v513, %v476
        %v515 = vshrl.u32 %v514, 4
        %v516 = vand.u32 %v514, 15
        %v517 = vsub.s32 0, %v516
        %v518 = vsel %vm512, %v517, %v516
        %vm519 = vcmp.lt.s32.totalorder %v477, 0
        %v520 = vsub.s32 0, %v477
        %v521 = vsel %vm519, %v520, %v477
        %v522 = vshrl.u32 %v521, 4
        %v523 = vand.u32 %v521, 15
        %v524 = vsub.s32 0, %v523
        %v525 = vsel %vm519, %v524, %v523
        %vm526 = vcmp.lt.s32.totalorder %v478, 0
        %v527 = vsub.s32 0, %v478
        %v528 = vsel %vm526, %v527, %v478
        %v529 = vshrl.u32 %v528, 4
        %v530 = vand.u32 %v528, 15
        %v531 = vsub.s32 0, %v530
        %v532 = vsel %vm526, %v531, %v530
        %vm533 = vcmp.lt.s32.totalorder %v479, 0
        %v534 = vsub.s32 0, %v479
        %v535 = vsel %vm533, %v534, %v479
        %v536 = vshrl.u32 %v535, 4
        %v537 = vand.u32 %v535, 15
        %v538 = vsub.s32 0, %v537
        %v539 = vsel %vm533, %v538, %v537
        %vm540 = vcmp.lt.s32.totalorder %v480, 0
        %v541 = vsub.s32 0, %v480
        %v542 = vsel %vm540, %v541, %v480
        %v543 = vshrl.u32 %v542, 4
        %v544 = vand.u32 %v542, 15
        %v545 = vsub.s32 0, %v544
        %v546 = vsel %vm540, %v545, %v544
        %vm547 = vcmp.lt.s32.totalorder %v481, 0
        %v548 = vsub.s32 0, %v481
        %v549 = vsel %vm547, %v548, %v481
        %v550 = vshrl.u32 %v549, 4
        %v551 = vand.u32 %v549, 15
        %v552 = vsub.s32 0, %v551
        %v553 = vsel %vm547, %v552, %v551
        %vm554 = vcmp.lt.s32.totalorder %v482, 0
        %v555 = vsub.s32 0, %v482
        %v556 = vsel %vm554, %v555, %v482
        %v557 = vshrl.u32 %v556, 4
        %v558 = vand.u32 %v556, 15
        %v559 = vsub.s32 0, %v558
        %v560 = vsel %vm554, %v559, %v558
        %vm561 = vcmp.lt.s32.totalorder %v483, 0
        %v562 = vsub.s32 0, %v483
        %v563 = vsel %vm561, %v562, %v483
        %v564 = vshrl.u32 %v563, 4
        %v565 = vand.u32 %v563, 15
        %v566 = vsub.s32 0, %v565
        %v567 = vsel %vm561, %v566, %v565
        %vm568 = vcmp.lt.s32.totalorder %v484, 0
        %v569 = vsub.s32 0, %v484
        %v570 = vsel %vm568, %v569, %v484
        %v571 = vshrl.u32 %v570, 4
        %v572 = vand.u32 %v570, 15
        %v573 = vsub.s32 0, %v572
        %v574 = vsel %vm568, %v573, %v572
        %vm575 = vcmp.lt.s32.totalorder %v485, 0
        %v576 = vsub.s32 0, %v485
        %v577 = vsel %vm575, %v576, %v485
        %v578 = vshrl.u32 %v577, 4
        %v579 = vand.u32 %v577, 15
        %v580 = vsub.s32 0, %v579
        %v581 = vsel %vm575, %v580, %v579
        %vm582 = vcmp.lt.s32.totalorder %v486, 0
        %v583 = vsub.s32 0, %v486
        %v584 = vsel %vm582, %v583, %v486
        %v585 = vshrl.u32 %v584, 4
        %v586 = vand.u32 %v584, 15
        %v587 = vsub.s32 0, %v586
        %v588 = vsel %vm582, %v587, %v586
        %vm589 = vcmp.lt.s32.totalorder %v487, 0
        %v590 = vsub.s32 0, %v487
        %v591 = vsel %vm589, %v590, %v487
        %v592 = vshrl.u32 %v591, 4
        %v593 = vand.u32 %v591, 15
        %v594 = vsub.s32 0, %v593
        %v595 = vsel %vm589, %v594, %v593
        %vm596 = vcmp.lt.s32.totalorder %v488, 0
        %v597 = vsub.s32 0, %v488
        %v598 = vsel %vm596, %v597, %v488
        %v599 = vshrl.u32 %v598, 4
        %v600 = vand.u32 %v598, 15
        %v601 = vsub.s32 0, %v600
        %v602 = vsel %vm596, %v601, %v600
        %vm603 = vcmp.lt.s32.totalorder %v489, 0
        %v604 = vsub.s32 0, %v489
        %v605 = vsel %vm603, %v604, %v489
        %v606 = vshrl.u32 %v605, 4
        %v607 = vand.u32 %v605, 15
        %v608 = vsub.s32 0, %v607
        %v609 = vsel %vm603, %v608, %v607
        %vm610 = vcmp.lt.s32.totalorder %v490, 0
        %v611 = vsub.s32 0, %v490
        %v612 = vsel %vm610, %v611, %v490
        %v613 = vshrl.u32 %v612, 4
        %v614 = vand.u32 %v612, 15
        %v615 = vsub.s32 0, %v614
        %v616 = vsel %vm610, %v615, %v614
        %vm617 = vcmp.lt.s32.totalorder %v491, 0
        %v618 = vsub.s32 0, %v491
        %v619 = vsel %vm617, %v618, %v491
        %v620 = vshrl.u32 %v619, 4
        %v621 = vand.u32 %v619, 15
        %v622 = vsub.s32 0, %v621
        %v623 = vsel %vm617, %v622, %v621
        %vm624 = vcmp.lt.s32.totalorder %v492, 0
        %v625 = vsub.s32 0, %v492
        %v626 = vsel %vm624, %v625, %v492
        %v627 = vshrl.u32 %v626, 4
        %v628 = vand.u32 %v626, 15
        %v629 = vsub.s32 0, %v628
        %v630 = vsel %vm624, %v629, %v628
        %vm631 = vcmp.lt.s32.totalorder %v493, 0
        %v632 = vsub.s32 0, %v493
        %v633 = vsel %vm631, %v632, %v493
        %v634 = vshrl.u32 %v633, 4
        %v635 = vand.u32 %v633, 15
        %v636 = vsub.s32 0, %v635
        %v637 = vsel %vm631, %v636, %v635
        %vm638 = vcmp.lt.s32.totalorder %v494, 0
        %v639 = vsub.s32 0, %v494
        %v640 = vsel %vm638, %v639, %v494
        %v641 = vshrl.u32 %v640, 4
        %v642 = vand.u32 %v640, 15
        %v643 = vsub.s32 0, %v642
        %v644 = vsel %vm638, %v643, %v642
        %vm645 = vcmp.lt.s32.totalorder %v495, 0
        %v646 = vsub.s32 0, %v495
        %v647 = vsel %vm645, %v646, %v495
        %v648 = vshrl.u32 %v647, 4
        %v649 = vand.u32 %v647, 15
        %v650 = vsub.s32 0, %v649
        %v651 = vsel %vm645, %v650, %v649
        %vm652 = vcmp.lt.s32.totalorder %v496, 0
        %v653 = vsub.s32 0, %v496
        %v654 = vsel %vm652, %v653, %v496
        %v655 = vshrl.u32 %v654, 4
        %v656 = vand.u32 %v654, 15
        %v657 = vsub.s32 0, %v656
        %v658 = vsel %vm652, %v657, %v656
        %vm659 = vcmp.lt.s32.totalorder %v497, 0
        %v660 = vsub.s32 0, %v497
        %v661 = vsel %vm659, %v660, %v497
        %v662 = vshrl.u32 %v661, 4
        %v663 = vand.u32 %v661, 15
        %v664 = vsub.s32 0, %v663
        %v665 = vsel %vm659, %v664, %v663
        %vm666 = vcmp.lt.s32.totalorder %v498, 0
        %v667 = vsub.s32 0, %v498
        %v668 = vsel %vm666, %v667, %v498
        %v669 = vshrl.u32 %v668, 4
        %v670 = vand.u32 %v668, 15
        %v671 = vsub.s32 0, %v670
        %v672 = vsel %vm666, %v671, %v670
        %vm673 = vcmp.lt.s32.totalorder %v499, 0
        %v674 = vsub.s32 0, %v499
        %v675 = vsel %vm673, %v674, %v499
        %v676 = vshrl.u32 %v675, 4
        %v677 = vand.u32 %v675, 15
        %v678 = vsub.s32 0, %v677
        %v679 = vsel %vm673, %v678, %v677
        %vm680 = vcmp.lt.s32.totalorder %v500, 0
        %v681 = vsub.s32 0, %v500
        %v682 = vsel %vm680, %v681, %v500
        %v683 = vshrl.u32 %v682, 4
        %v684 = vand.u32 %v682, 15
        %v685 = vsub.s32 0, %v684
        %v686 = vsel %vm680, %v685, %v684
        %vm687 = vcmp.lt.s32.totalorder %v501, 0
        %v688 = vsub.s32 0, %v501
        %v689 = vsel %vm687, %v688, %v501
        %v690 = vshrl.u32 %v689, 4
        %v691 = vand.u32 %v689, 15
        %v692 = vsub.s32 0, %v691
        %v693 = vsel %vm687, %v692, %v691
        %vm694 = vcmp.lt.s32.totalorder %v502, 0
        %v695 = vsub.s32 0, %v502
        %v696 = vsel %vm694, %v695, %v502
        %v697 = vshrl.u32 %v696, 4
        %v698 = vand.u32 %v696, 15
        %v699 = vsub.s32 0, %v698
        %v700 = vsel %vm694, %v699, %v698
        %vm701 = vcmp.lt.s32.totalorder %v503, 0
        %v702 = vsub.s32 0, %v503
        %v703 = vsel %vm701, %v702, %v503
        %v704 = vshrl.u32 %v703, 4
        %v705 = vand.u32 %v703, 15
        %v706 = vsub.s32 0, %v705
        %v707 = vsel %vm701, %v706, %v705
        %vm708 = vcmp.lt.s32.totalorder %v504, 0
        %v709 = vsub.s32 0, %v504
        %v710 = vsel %vm708, %v709, %v504
        %v711 = vshrl.u32 %v710, 4
        %v712 = vand.u32 %v710, 15
        %v713 = vsub.s32 0, %v712
        %v714 = vsel %vm708, %v713, %v712
        %vm715 = vcmp.lt.s32.totalorder %v505, 0
        %v716 = vsub.s32 0, %v505
        %v717 = vsel %vm715, %v716, %v505
        %v718 = vshrl.u32 %v717, 4
        %v719 = vand.u32 %v717, 15
        %v720 = vsub.s32 0, %v719
        %v721 = vsel %vm715, %v720, %v719
        %vm722 = vcmp.lt.s32.totalorder %v506, 0
        %v723 = vsub.s32 0, %v506
        %v724 = vsel %vm722, %v723, %v506
        %v725 = vshrl.u32 %v724, 4
        %v726 = vand.u32 %v724, 15
        %v727 = vsub.s32 0, %v726
        %v728 = vsel %vm722, %v727, %v726
        %vm729 = vcmp.lt.s32.totalorder %v507, 0
        %v730 = vsub.s32 0, %v507
        %v731 = vsel %vm729, %v730, %v507
        %v732 = vshrl.u32 %v731, 4
        %v733 = vand.u32 %v731, 15
        %v734 = vsub.s32 0, %v733
        %v735 = vsel %vm729, %v734, %v733
        %vm736 = vcmp.lt.s32.totalorder %v508, 0
        %v737 = vsub.s32 0, %v508
        %v738 = vsel %vm736, %v737, %v508
        %v739 = vshrl.u32 %v738, 4
        %v740 = vand.u32 %v738, 15
        %v741 = vsub.s32 0, %v740
        %v742 = vsel %vm736, %v741, %v740
        %vm743 = vcmp.lt.s32.totalorder %v509, 0
        %v744 = vsub.s32 0, %v509
        %v745 = vsel %vm743, %v744, %v509
        %v746 = vshrl.u32 %v745, 4
        %v747 = vand.u32 %v745, 15
        %v748 = vsub.s32 0, %v747
        %v749 = vsel %vm743, %v748, %v747
        %vm750 = vcmp.lt.s32.totalorder %v510, 0
        %v751 = vsub.s32 0, %v510
        %v752 = vsel %vm750, %v751, %v510
        %v753 = vshrl.u32 %v752, 4
        %v754 = vand.u32 %v752, 15
        %v755 = vsub.s32 0, %v754
        %v756 = vsel %vm750, %v755, %v754
        %vm757 = vcmp.lt.s32.totalorder %v511, 0
        %v758 = vsub.s32 0, %v511
        %v759 = vsel %vm757, %v758, %v511
        %v760 = vshrl.u32 %v759, 4
        %v761 = vand.u32 %v759, 15
        %v762 = vsub.s32 0, %v761
        %v763 = vsel %vm757, %v762, %v761
        %vm764 = vcmp.ne.s32.totalorder %v518, 0
        %vm765 = vcmp.ne.s32.totalorder %v525, 0
        %vm766 = vcmp.ne.s32.totalorder %v532, 0
        %vm767 = vcmp.ne.s32.totalorder %v539, 0
        %vm768 = vcmp.ne.s32.totalorder %v546, 0
        %vm769 = vcmp.ne.s32.totalorder %v553, 0
        %vm770 = vcmp.ne.s32.totalorder %v560, 0
        %vm771 = vcmp.ne.s32.totalorder %v567, 0
        %vm772 = vcmp.ne.s32.totalorder %v574, 0
        %vm773 = vcmp.ne.s32.totalorder %v581, 0
        %vm774 = vcmp.ne.s32.totalorder %v588, 0
        %vm775 = vcmp.ne.s32.totalorder %v595, 0
        %vm776 = vcmp.ne.s32.totalorder %v602, 0
        %vm777 = vcmp.ne.s32.totalorder %v609, 0
        %vm778 = vcmp.ne.s32.totalorder %v616, 0
        %vm779 = vcmp.ne.s32.totalorder %v623, 0
        %vm780 = vcmp.ne.s32.totalorder %v630, 0
        %vm781 = vcmp.ne.s32.totalorder %v637, 0
        %vm782 = vcmp.ne.s32.totalorder %v644, 0
        %vm783 = vcmp.ne.s32.totalorder %v651, 0
        %vm784 = vcmp.ne.s32.totalorder %v658, 0
        %vm785 = vcmp.ne.s32.totalorder %v665, 0
        %vm786 = vcmp.ne.s32.totalorder %v672, 0
        %vm787 = vcmp.ne.s32.totalorder %v679, 0
        %vm788 = vcmp.ne.s32.totalorder %v686, 0
        %vm789 = vcmp.ne.s32.totalorder %v693, 0
        %vm790 = vcmp.ne.s32.totalorder %v700, 0
        %vm791 = vcmp.ne.s32.totalorder %v707, 0
        %vm792 = vcmp.ne.s32.totalorder %v714, 0
        %vm793 = vcmp.ne.s32.totalorder %v721, 0
        %vm794 = vcmp.ne.s32.totalorder %v728, 0
        %vm795 = vcmp.ne.s32.totalorder %v735, 0
        %vm796 = vcmp.ne.s32.totalorder %v742, 0
        %vm797 = vcmp.ne.s32.totalorder %v749, 0
        %vm798 = vcmp.ne.s32.totalorder %v756, 0
        %vm799 = vcmp.ne.s32.totalorder %v763, 0
        %vm800 = vcmp.lt.s32.totalorder %v518, 0
        %vm801 = vcmp.lt.s32.totalorder %v525, 0
        %vm802 = vcmp.lt.s32.totalorder %v532, 0
        %vm803 = vcmp.lt.s32.totalorder %v539, 0
        %vm804 = vcmp.lt.s32.totalorder %v546, 0
        %vm805 = vcmp.lt.s32.totalorder %v553, 0
        %vm806 = vcmp.lt.s32.totalorder %v560, 0
        %vm807 = vcmp.lt.s32.totalorder %v567, 0
        %vm808 = vcmp.lt.s32.totalorder %v574, 0
        %vm809 = vcmp.lt.s32.totalorder %v581, 0
        %vm810 = vcmp.lt.s32.totalorder %v588, 0
        %vm811 = vcmp.lt.s32.totalorder %v595, 0
        %vm812 = vcmp.lt.s32.totalorder %v602, 0
        %vm813 = vcmp.lt.s32.totalorder %v609, 0
        %vm814 = vcmp.lt.s32.totalorder %v616, 0
        %vm815 = vcmp.lt.s32.totalorder %v623, 0
        %vm816 = vcmp.lt.s32.totalorder %v630, 0
        %vm817 = vcmp.lt.s32.totalorder %v637, 0
        %vm818 = vcmp.lt.s32.totalorder %v644, 0
        %vm819 = vcmp.lt.s32.totalorder %v651, 0
        %vm820 = vcmp.lt.s32.totalorder %v658, 0
        %vm821 = vcmp.lt.s32.totalorder %v665, 0
        %vm822 = vcmp.lt.s32.totalorder %v672, 0
        %vm823 = vcmp.lt.s32.totalorder %v679, 0
        %vm824 = vcmp.lt.s32.totalorder %v686, 0
        %vm825 = vcmp.lt.s32.totalorder %v693, 0
        %vm826 = vcmp.lt.s32.totalorder %v700, 0
        %vm827 = vcmp.lt.s32.totalorder %v707, 0
        %vm828 = vcmp.lt.s32.totalorder %v714, 0
        %vm829 = vcmp.lt.s32.totalorder %v721, 0
        %vm830 = vcmp.lt.s32.totalorder %v728, 0
        %vm831 = vcmp.lt.s32.totalorder %v735, 0
        %vm832 = vcmp.lt.s32.totalorder %v742, 0
        %vm833 = vcmp.lt.s32.totalorder %v749, 0
        %vm834 = vcmp.lt.s32.totalorder %v756, 0
        %vm835 = vcmp.lt.s32.totalorder %v763, 0
        %vm836 = vmand %vm800, %vm764
        %vm837 = vmand %vm801, %vm765
        %vm838 = vmand %vm802, %vm766
        %vm839 = vmand %vm803, %vm767
        %vm840 = vmand %vm804, %vm768
        %vm841 = vmand %vm805, %vm769
        %vm842 = vmand %vm806, %vm770
        %vm843 = vmand %vm807, %vm771
        %vm844 = vmand %vm808, %vm772
        %vm845 = vmand %vm809, %vm773
        %vm846 = vmand %vm810, %vm774
        %vm847 = vmand %vm811, %vm775
        %vm848 = vmand %vm812, %vm776
        %vm849 = vmand %vm813, %vm777
        %vm850 = vmand %vm814, %vm778
        %vm851 = vmand %vm815, %vm779
        %vm852 = vmand %vm816, %vm780
        %vm853 = vmand %vm817, %vm781
        %vm854 = vmand %vm818, %vm782
        %vm855 = vmand %vm819, %vm783
        %vm856 = vmand %vm820, %vm784
        %vm857 = vmand %vm821, %vm785
        %vm858 = vmand %vm822, %vm786
        %vm859 = vmand %vm823, %vm787
        %vm860 = vmand %vm824, %vm788
        %vm861 = vmand %vm825, %vm789
        %vm862 = vmand %vm826, %vm790
        %vm863 = vmand %vm827, %vm791
        %vm864 = vmand %vm828, %vm792
        %vm865 = vmand %vm829, %vm793
        %vm866 = vmand %vm830, %vm794
        %vm867 = vmand %vm831, %vm795
        %vm868 = vmand %vm832, %vm796
        %vm869 = vmand %vm833, %vm797
        %vm870 = vmand %vm834, %vm798
        %vm871 = vmand %vm835, %vm799
        %v872 = vadd.s32 %v518, 16
        %v873 = vadd.s32 %v525, 16
        %v874 = vadd.s32 %v532, 16
        %v875 = vadd.s32 %v539, 16
        %v876 = vadd.s32 %v546, 16
        %v877 = vadd.s32 %v553, 16
        %v878 = vadd.s32 %v560, 16
        %v879 = vadd.s32 %v567, 16
        %v880 = vadd.s32 %v574, 16
        %v881 = vadd.s32 %v581, 16
        %v882 = vadd.s32 %v588, 16
        %v883 = vadd.s32 %v595, 16
        %v884 = vadd.s32 %v602, 16
        %v885 = vadd.s32 %v609, 16
        %v886 = vadd.s32 %v616, 16
        %v887 = vadd.s32 %v623, 16
        %v888 = vadd.s32 %v630, 16
        %v889 = vadd.s32 %v637, 16
        %v890 = vadd.s32 %v644, 16
        %v891 = vadd.s32 %v651, 16
        %v892 = vadd.s32 %v658, 16
        %v893 = vadd.s32 %v665, 16
        %v894 = vadd.s32 %v672, 16
        %v895 = vadd.s32 %v679, 16
        %v896 = vadd.s32 %v686, 16
        %v897 = vadd.s32 %v693, 16
        %v898 = vadd.s32 %v700, 16
        %v899 = vadd.s32 %v707, 16
        %v900 = vadd.s32 %v714, 16
        %v901 = vadd.s32 %v721, 16
        %v902 = vadd.s32 %v728, 16
        %v903 = vadd.s32 %v735, 16
        %v904 = vadd.s32 %v742, 16
        %v905 = vadd.s32 %v749, 16
        %v906 = vadd.s32 %v756, 16
        %v907 = vadd.s32 %v763, 16
        %v908 = vsel %vm836, %v872, %v518
        %v909 = vsel %vm837, %v873, %v525
        %v910 = vsel %vm838, %v874, %v532
        %v911 = vsel %vm839, %v875, %v539
        %v912 = vsel %vm840, %v876, %v546
        %v913 = vsel %vm841, %v877, %v553
        %v914 = vsel %vm842, %v878, %v560
        %v915 = vsel %vm843, %v879, %v567
        %v916 = vsel %vm844, %v880, %v574
        %v917 = vsel %vm845, %v881, %v581
        %v918 = vsel %vm846, %v882, %v588
        %v919 = vsel %vm847, %v883, %v595
        %v920 = vsel %vm848, %v884, %v602
        %v921 = vsel %vm849, %v885, %v609
        %v922 = vsel %vm850, %v886, %v616
        %v923 = vsel %vm851, %v887, %v623
        %v924 = vsel %vm852, %v888, %v630
        %v925 = vsel %vm853, %v889, %v637
        %v926 = vsel %vm854, %v890, %v644
        %v927 = vsel %vm855, %v891, %v651
        %v928 = vsel %vm856, %v892, %v658
        %v929 = vsel %vm857, %v893, %v665
        %v930 = vsel %vm858, %v894, %v672
        %v931 = vsel %vm859, %v895, %v679
        %v932 = vsel %vm860, %v896, %v686
        %v933 = vsel %vm861, %v897, %v693
        %v934 = vsel %vm862, %v898, %v700
        %v935 = vsel %vm863, %v899, %v707
        %v936 = vsel %vm864, %v900, %v714
        %v937 = vsel %vm865, %v901, %v721
        %v938 = vsel %vm866, %v902, %v728
        %v939 = vsel %vm867, %v903, %v735
        %v940 = vsel %vm868, %v904, %v742
        %v941 = vsel %vm869, %v905, %v749
        %v942 = vsel %vm870, %v906, %v756
        %v943 = vsel %vm871, %v907, %v763
        %vm944 = vcmp.ne.s32.totalorder %v908, 0
        %vm945 = vcmp.ne.s32.totalorder %v909, 0
        %vm946 = vcmp.ne.s32.totalorder %v910, 0
        %vm947 = vcmp.ne.s32.totalorder %v911, 0
        %vm948 = vcmp.ne.s32.totalorder %v912, 0
        %vm949 = vcmp.ne.s32.totalorder %v913, 0
        %vm950 = vcmp.ne.s32.totalorder %v914, 0
        %vm951 = vcmp.ne.s32.totalorder %v915, 0
        %vm952 = vcmp.ne.s32.totalorder %v916, 0
        %vm953 = vcmp.ne.s32.totalorder %v917, 0
        %vm954 = vcmp.ne.s32.totalorder %v918, 0
        %vm955 = vcmp.ne.s32.totalorder %v919, 0
        %vm956 = vcmp.ne.s32.totalorder %v920, 0
        %vm957 = vcmp.ne.s32.totalorder %v921, 0
        %vm958 = vcmp.ne.s32.totalorder %v922, 0
        %vm959 = vcmp.ne.s32.totalorder %v923, 0
        %vm960 = vcmp.ne.s32.totalorder %v924, 0
        %vm961 = vcmp.ne.s32.totalorder %v925, 0
        %vm962 = vcmp.ne.s32.totalorder %v926, 0
        %vm963 = vcmp.ne.s32.totalorder %v927, 0
        %vm964 = vcmp.ne.s32.totalorder %v928, 0
        %vm965 = vcmp.ne.s32.totalorder %v929, 0
        %vm966 = vcmp.ne.s32.totalorder %v930, 0
        %vm967 = vcmp.ne.s32.totalorder %v931, 0
        %vm968 = vcmp.ne.s32.totalorder %v932, 0
        %vm969 = vcmp.ne.s32.totalorder %v933, 0
        %vm970 = vcmp.ne.s32.totalorder %v934, 0
        %vm971 = vcmp.ne.s32.totalorder %v935, 0
        %vm972 = vcmp.ne.s32.totalorder %v936, 0
        %vm973 = vcmp.ne.s32.totalorder %v937, 0
        %vm974 = vcmp.ne.s32.totalorder %v938, 0
        %vm975 = vcmp.ne.s32.totalorder %v939, 0
        %vm976 = vcmp.ne.s32.totalorder %v940, 0
        %vm977 = vcmp.ne.s32.totalorder %v941, 0
        %vm978 = vcmp.ne.s32.totalorder %v942, 0
        %vm979 = vcmp.ne.s32.totalorder %v943, 0
        %v980 = vsel %vm944, 1, 0
        %v981 = vsel %vm945, 1, 0
        %v982 = vsel %vm946, 1, 0
        %v983 = vsel %vm947, 1, 0
        %v984 = vsel %vm948, 1, 0
        %v985 = vsel %vm949, 1, 0
        %v986 = vsel %vm950, 1, 0
        %v987 = vsel %vm951, 1, 0
        %v988 = vsel %vm952, 1, 0
        %v989 = vsel %vm953, 1, 0
        %v990 = vsel %vm954, 1, 0
        %v991 = vsel %vm955, 1, 0
        %v992 = vsel %vm956, 1, 0
        %v993 = vsel %vm957, 1, 0
        %v994 = vsel %vm958, 1, 0
        %v995 = vsel %vm959, 1, 0
        %v996 = vsel %vm960, 1, 0
        %v997 = vsel %vm961, 1, 0
        %v998 = vsel %vm962, 1, 0
        %v999 = vsel %vm963, 1, 0
        %v1000 = vsel %vm964, 1, 0
        %v1001 = vsel %vm965, 1, 0
        %v1002 = vsel %vm966, 1, 0
        %v1003 = vsel %vm967, 1, 0
        %v1004 = vsel %vm968, 1, 0
        %v1005 = vsel %vm969, 1, 0
        %v1006 = vsel %vm970, 1, 0
        %v1007 = vsel %vm971, 1, 0
        %v1008 = vsel %vm972, 1, 0
        %v1009 = vsel %vm973, 1, 0
        %v1010 = vsel %vm974, 1, 0
        %v1011 = vsel %vm975, 1, 0
        %v1012 = vsel %vm976, 1, 0
        %v1013 = vsel %vm977, 1, 0
        %v1014 = vsel %vm978, 1, 0
        %v1015 = vsel %vm979, 1, 0
        %v1016 = vcvt.s32.f32 %v980
        %v1017 = vcvt.s32.f32 %v981
        %v1018 = vcvt.s32.f32 %v982
        %v1019 = vcvt.s32.f32 %v983
        %v1020 = vcvt.s32.f32 %v984
        %v1021 = vcvt.s32.f32 %v985
        %v1022 = vcvt.s32.f32 %v986
        %v1023 = vcvt.s32.f32 %v987
        %v1024 = vcvt.s32.f32 %v988
        %v1025 = vcvt.s32.f32 %v989
        %v1026 = vcvt.s32.f32 %v990
        %v1027 = vcvt.s32.f32 %v991
        %v1028 = vcvt.s32.f32 %v992
        %v1029 = vcvt.s32.f32 %v993
        %v1030 = vcvt.s32.f32 %v994
        %v1031 = vcvt.s32.f32 %v995
        %v1032 = vcvt.s32.f32 %v996
        %v1033 = vcvt.s32.f32 %v997
        %v1034 = vcvt.s32.f32 %v998
        %v1035 = vcvt.s32.f32 %v999
        %v1036 = vcvt.s32.f32 %v1000
        %v1037 = vcvt.s32.f32 %v1001
        %v1038 = vcvt.s32.f32 %v1002
        %v1039 = vcvt.s32.f32 %v1003
        %v1040 = vcvt.s32.f32 %v1004
        %v1041 = vcvt.s32.f32 %v1005
        %v1042 = vcvt.s32.f32 %v1006
        %v1043 = vcvt.s32.f32 %v1007
        %v1044 = vcvt.s32.f32 %v1008
        %v1045 = vcvt.s32.f32 %v1009
        %v1046 = vcvt.s32.f32 %v1010
        %v1047 = vcvt.s32.f32 %v1011
        %v1048 = vcvt.s32.f32 %v1012
        %v1049 = vcvt.s32.f32 %v1013
        %v1050 = vcvt.s32.f32 %v1014
        %v1051 = vcvt.s32.f32 %v1015
        %vm1052 = vcmp.ne.s32.totalorder %v908, 15
        %vm1053 = vcmp.ne.s32.totalorder %v909, 15
        %vm1054 = vcmp.ne.s32.totalorder %v910, 15
        %vm1055 = vcmp.ne.s32.totalorder %v911, 15
        %vm1056 = vcmp.ne.s32.totalorder %v912, 15
        %vm1057 = vcmp.ne.s32.totalorder %v913, 15
        %vm1058 = vcmp.ne.s32.totalorder %v914, 15
        %vm1059 = vcmp.ne.s32.totalorder %v915, 15
        %vm1060 = vcmp.ne.s32.totalorder %v916, 15
        %vm1061 = vcmp.ne.s32.totalorder %v917, 15
        %vm1062 = vcmp.ne.s32.totalorder %v918, 15
        %vm1063 = vcmp.ne.s32.totalorder %v919, 15
        %vm1064 = vcmp.ne.s32.totalorder %v920, 15
        %vm1065 = vcmp.ne.s32.totalorder %v921, 15
        %vm1066 = vcmp.ne.s32.totalorder %v922, 15
        %vm1067 = vcmp.ne.s32.totalorder %v923, 15
        %vm1068 = vcmp.ne.s32.totalorder %v924, 15
        %vm1069 = vcmp.ne.s32.totalorder %v925, 15
        %vm1070 = vcmp.ne.s32.totalorder %v926, 15
        %vm1071 = vcmp.ne.s32.totalorder %v927, 15
        %vm1072 = vcmp.ne.s32.totalorder %v928, 15
        %vm1073 = vcmp.ne.s32.totalorder %v929, 15
        %vm1074 = vcmp.ne.s32.totalorder %v930, 15
        %vm1075 = vcmp.ne.s32.totalorder %v931, 15
        %vm1076 = vcmp.ne.s32.totalorder %v932, 15
        %vm1077 = vcmp.ne.s32.totalorder %v933, 15
        %vm1078 = vcmp.ne.s32.totalorder %v934, 15
        %vm1079 = vcmp.ne.s32.totalorder %v935, 15
        %vm1080 = vcmp.ne.s32.totalorder %v936, 15
        %vm1081 = vcmp.ne.s32.totalorder %v937, 15
        %vm1082 = vcmp.ne.s32.totalorder %v938, 15
        %vm1083 = vcmp.ne.s32.totalorder %v939, 15
        %vm1084 = vcmp.ne.s32.totalorder %v940, 15
        %vm1085 = vcmp.ne.s32.totalorder %v941, 15
        %vm1086 = vcmp.ne.s32.totalorder %v942, 15
        %vm1087 = vcmp.ne.s32.totalorder %v943, 15
        %v1088 = vsel %vm1052, 1, 0
        %v1089 = vsel %vm1053, 1, 0
        %v1090 = vsel %vm1054, 1, 0
        %v1091 = vsel %vm1055, 1, 0
        %v1092 = vsel %vm1056, 1, 0
        %v1093 = vsel %vm1057, 1, 0
        %v1094 = vsel %vm1058, 1, 0
        %v1095 = vsel %vm1059, 1, 0
        %v1096 = vsel %vm1060, 1, 0
        %v1097 = vsel %vm1061, 1, 0
        %v1098 = vsel %vm1062, 1, 0
        %v1099 = vsel %vm1063, 1, 0
        %v1100 = vsel %vm1064, 1, 0
        %v1101 = vsel %vm1065, 1, 0
        %v1102 = vsel %vm1066, 1, 0
        %v1103 = vsel %vm1067, 1, 0
        %v1104 = vsel %vm1068, 1, 0
        %v1105 = vsel %vm1069, 1, 0
        %v1106 = vsel %vm1070, 1, 0
        %v1107 = vsel %vm1071, 1, 0
        %v1108 = vsel %vm1072, 1, 0
        %v1109 = vsel %vm1073, 1, 0
        %v1110 = vsel %vm1074, 1, 0
        %v1111 = vsel %vm1075, 1, 0
        %v1112 = vsel %vm1076, 1, 0
        %v1113 = vsel %vm1077, 1, 0
        %v1114 = vsel %vm1078, 1, 0
        %v1115 = vsel %vm1079, 1, 0
        %v1116 = vsel %vm1080, 1, 0
        %v1117 = vsel %vm1081, 1, 0
        %v1118 = vsel %vm1082, 1, 0
        %v1119 = vsel %vm1083, 1, 0
        %v1120 = vsel %vm1084, 1, 0
        %v1121 = vsel %vm1085, 1, 0
        %v1122 = vsel %vm1086, 1, 0
        %v1123 = vsel %vm1087, 1, 0
        %v1124 = vcvt.s32.f32 %v1088
        %v1125 = vcvt.s32.f32 %v1089
        %v1126 = vcvt.s32.f32 %v1090
        %v1127 = vcvt.s32.f32 %v1091
        %v1128 = vcvt.s32.f32 %v1092
        %v1129 = vcvt.s32.f32 %v1093
        %v1130 = vcvt.s32.f32 %v1094
        %v1131 = vcvt.s32.f32 %v1095
        %v1132 = vcvt.s32.f32 %v1096
        %v1133 = vcvt.s32.f32 %v1097
        %v1134 = vcvt.s32.f32 %v1098
        %v1135 = vcvt.s32.f32 %v1099
        %v1136 = vcvt.s32.f32 %v1100
        %v1137 = vcvt.s32.f32 %v1101
        %v1138 = vcvt.s32.f32 %v1102
        %v1139 = vcvt.s32.f32 %v1103
        %v1140 = vcvt.s32.f32 %v1104
        %v1141 = vcvt.s32.f32 %v1105
        %v1142 = vcvt.s32.f32 %v1106
        %v1143 = vcvt.s32.f32 %v1107
        %v1144 = vcvt.s32.f32 %v1108
        %v1145 = vcvt.s32.f32 %v1109
        %v1146 = vcvt.s32.f32 %v1110
        %v1147 = vcvt.s32.f32 %v1111
        %v1148 = vcvt.s32.f32 %v1112
        %v1149 = vcvt.s32.f32 %v1113
        %v1150 = vcvt.s32.f32 %v1114
        %v1151 = vcvt.s32.f32 %v1115
        %v1152 = vcvt.s32.f32 %v1116
        %v1153 = vcvt.s32.f32 %v1117
        %v1154 = vcvt.s32.f32 %v1118
        %v1155 = vcvt.s32.f32 %v1119
        %v1156 = vcvt.s32.f32 %v1120
        %v1157 = vcvt.s32.f32 %v1121
        %v1158 = vcvt.s32.f32 %v1122
        %v1159 = vcvt.s32.f32 %v1123
        %vm1162 = vcmask 1040384
        %v1163 = vrot.slane %v437, 7
        %v1164 = vrot.slane %v438, 7
        %v1165 = vsel %vm1162, %v1163, %v1164
        %v1201 = vrot.slane %v443, 7
        %v1202 = vrot.slane %v444, 7
        %v1203 = vsel %vm1162, %v1201, %v1202
        %v1204 = vrot.slane %v445, 7
        %v1205 = vsel %vm1162, %v1202, %v1204
        %v1206 = vrot.slane %v446, 7
        %v1207 = vsel %vm1162, %v1204, %v1206
        %v1208 = vrot.slane %v447, 7
        %v1209 = vsel %vm1162, %v1206, %v1208
        %v1210 = vrot.slane %v448, 7
        %v1211 = vsel %vm1162, %v1208, %v1210
        %v1212 = vrot.slane %v449, 7
        %v1213 = vsel %vm1162, %v1210, %v1212
        %v1214 = vrot.slane %v450, 7
        %v1215 = vsel %vm1162, %v1212, %v1214
        %v1216 = vrot.slane %v451, 7
        %v1217 = vsel %vm1162, %v1214, %v1216
        %v1218 = vrot.slane %v452, 7
        %v1219 = vsel %vm1162, %v1216, %v1218
        %v1220 = vrot.slane %v453, 7
        %v1221 = vsel %vm1162, %v1218, %v1220
        %v1222 = vrot.slane %v454, 7
        %v1223 = vsel %vm1162, %v1220, %v1222
        %v1224 = vrot.slane %v455, 7
        %v1225 = vsel %vm1162, %v1222, %v1224
        %v1226 = vrot.slane %v456, 7
        %v1227 = vsel %vm1162, %v1224, %v1226
        %v1228 = vrot.slane %v457, 7
        %v1229 = vsel %vm1162, %v1226, %v1228
        %v1230 = vrot.slane %v458, 7
        %v1231 = vsel %vm1162, %v1228, %v1230
        %v1232 = vrot.slane %v459, 7
        %v1233 = vsel %vm1162, %v1230, %v1232
        %v1234 = vrot.slane %v460, 7
        %v1235 = vsel %vm1162, %v1232, %v1234
        %v1236 = vrot.slane %v461, 7
        %v1237 = vsel %vm1162, %v1234, %v1236
        %v1238 = vrot.slane %v462, 7
        %v1239 = vsel %vm1162, %v1236, %v1238
        %v1240 = vrot.slane %v463, 7
        %v1241 = vsel %vm1162, %v1238, %v1240
        %v1242 = vrot.slane %v464, 7
        %v1243 = vsel %vm1162, %v1240, %v1242
        %v1244 = vrot.slane %v465, 7
        %v1245 = vsel %vm1162, %v1242, %v1244
        %v1246 = vrot.slane %v466, 7
        %v1247 = vsel %vm1162, %v1244, %v1246
        %v1248 = vrot.slane %v467, 7
        %v1249 = vsel %vm1162, %v1246, %v1248
        %v1250 = vrot.slane %v468, 7
        %v1251 = vsel %vm1162, %v1248, %v1250
        %v1252 = vrot.slane %v469, 7
        %v1253 = vsel %vm1162, %v1250, %v1252
        %v1254 = vrot.slane %v470, 7
        %v1255 = vsel %vm1162, %v1252, %v1254
        %v1256 = vrot.slane %v471, 7
        %v1257 = vsel %vm1162, %v1254, %v1256
        %v1258 = vrot.slane %v472, 7
        %v1259 = vsel %vm1162, %v1256, %v1258
        %v1260 = vrot.slane %v473, 7
        %v1261 = vsel %vm1162, %v1258, %v1260
        %v1262 = vrot.slane %v474, 7
        %v1263 = vsel %vm1162, %v1260, %v1262
        %v1299 = vrot.slane %v441, 7
        %v1300 = vrot.slane %v442, 7
        %v1301 = vsel %vm1162, %v1299, %v1300
        %v1304 = vsel %vm1162, 0.0, %v1163
        %v1305 = vsel %vm1162, %v1164, %v1201
        %v1306 = vsel %vm1162, %v1262, %v1299
        %v1307 = vmul.f32 %v1304, %v1016
        %v1308 = vmul.f32 %v1165, %v1017
        %v1309 = vmul.f32 %v1305, %v1018
        %v1310 = vmul.f32 %v1203, %v1019
        %v1311 = vmul.f32 %v1205, %v1020
        %v1312 = vmul.f32 %v1207, %v1021
        %v1313 = vmul.f32 %v1209, %v1022
        %v1314 = vmul.f32 %v1211, %v1023
        %v1315 = vmul.f32 %v1213, %v1024
        %v1316 = vmul.f32 %v1215, %v1025
        %v1317 = vmul.f32 %v1217, %v1026
        %v1318 = vmul.f32 %v1219, %v1027
        %v1319 = vmul.f32 %v1221, %v1028
        %v1320 = vmul.f32 %v1223, %v1029
        %v1321 = vmul.f32 %v1225, %v1030
        %v1322 = vmul.f32 %v1227, %v1031
        %v1323 = vmul.f32 %v1229, %v1032
        %v1324 = vmul.f32 %v1231, %v1033
        %v1325 = vmul.f32 %v1233, %v1034
        %v1326 = vmul.f32 %v1235, %v1035
        %v1327 = vmul.f32 %v1237, %v1036
        %v1328 = vmul.f32 %v1239, %v1037
        %v1329 = vmul.f32 %v1241, %v1038
        %v1330 = vmul.f32 %v1243, %v1039
        %v1331 = vmul.f32 %v1245, %v1040
        %v1332 = vmul.f32 %v1247, %v1041
        %v1333 = vmul.f32 %v1249, %v1042
        %v1334 = vmul.f32 %v1251, %v1043
        %v1335 = vmul.f32 %v1253, %v1044
        %v1336 = vmul.f32 %v1255, %v1045
        %v1337 = vmul.f32 %v1257, %v1046
        %v1338 = vmul.f32 %v1259, %v1047
        %v1339 = vmul.f32 %v1261, %v1048
        %v1340 = vmul.f32 %v1263, %v1049
        %v1341 = vmul.f32 %v1306, %v1050
        %v1342 = vmul.f32 %v1301, %v1051
        %vm1343 = vcmask 1046528
        %v1344 = vrot.slane %v437, 1
        %v1345 = vrot.slane %v438, 1
        %v1346 = vsel %vm1343, %v1344, %v1345
        %v1349 = vrot.slane %v443, 1
        %v1350 = vrot.slane %v444, 1
        %v1351 = vsel %vm1343, %v1349, %v1350
        %v1352 = vrot.slane %v445, 1
        %v1353 = vsel %vm1343, %v1350, %v1352
        %v1354 = vrot.slane %v446, 1
        %v1355 = vsel %vm1343, %v1352, %v1354
        %v1356 = vrot.slane %v447, 1
        %v1357 = vsel %vm1343, %v1354, %v1356
        %v1358 = vrot.slane %v448, 1
        %v1359 = vsel %vm1343, %v1356, %v1358
        %v1360 = vrot.slane %v449, 1
        %v1361 = vsel %vm1343, %v1358, %v1360
        %v1362 = vrot.slane %v450, 1
        %v1363 = vsel %vm1343, %v1360, %v1362
        %v1364 = vrot.slane %v451, 1
        %v1365 = vsel %vm1343, %v1362, %v1364
        %v1366 = vrot.slane %v452, 1
        %v1367 = vsel %vm1343, %v1364, %v1366
        %v1368 = vrot.slane %v453, 1
        %v1369 = vsel %vm1343, %v1366, %v1368
        %v1370 = vrot.slane %v454, 1
        %v1371 = vsel %vm1343, %v1368, %v1370
        %v1372 = vrot.slane %v455, 1
        %v1373 = vsel %vm1343, %v1370, %v1372
        %v1374 = vrot.slane %v456, 1
        %v1375 = vsel %vm1343, %v1372, %v1374
        %v1376 = vrot.slane %v457, 1
        %v1377 = vsel %vm1343, %v1374, %v1376
        %v1378 = vrot.slane %v458, 1
        %v1379 = vsel %vm1343, %v1376, %v1378
        %v1380 = vrot.slane %v459, 1
        %v1381 = vsel %vm1343, %v1378, %v1380
        %v1382 = vrot.slane %v460, 1
        %v1383 = vsel %vm1343, %v1380, %v1382
        %v1384 = vrot.slane %v461, 1
        %v1385 = vsel %vm1343, %v1382, %v1384
        %v1386 = vrot.slane %v462, 1
        %v1387 = vsel %vm1343, %v1384, %v1386
        %v1388 = vrot.slane %v463, 1
        %v1389 = vsel %vm1343, %v1386, %v1388
        %v1390 = vrot.slane %v464, 1
        %v1391 = vsel %vm1343, %v1388, %v1390
        %v1392 = vrot.slane %v465, 1
        %v1393 = vsel %vm1343, %v1390, %v1392
        %v1394 = vrot.slane %v466, 1
        %v1395 = vsel %vm1343, %v1392, %v1394
        %v1396 = vrot.slane %v467, 1
        %v1397 = vsel %vm1343, %v1394, %v1396
        %v1398 = vrot.slane %v468, 1
        %v1399 = vsel %vm1343, %v1396, %v1398
        %v1400 = vrot.slane %v469, 1
        %v1401 = vsel %vm1343, %v1398, %v1400
        %v1402 = vrot.slane %v470, 1
        %v1403 = vsel %vm1343, %v1400, %v1402
        %v1404 = vrot.slane %v471, 1
        %v1405 = vsel %vm1343, %v1402, %v1404
        %v1406 = vrot.slane %v472, 1
        %v1407 = vsel %vm1343, %v1404, %v1406
        %v1408 = vrot.slane %v473, 1
        %v1409 = vsel %vm1343, %v1406, %v1408
        %v1410 = vrot.slane %v474, 1
        %v1411 = vsel %vm1343, %v1408, %v1410
        %v1445 = vrot.slane %v441, 1
        %v1446 = vrot.slane %v442, 1
        %v1447 = vsel %vm1343, %v1445, %v1446
        %v1451 = vsel %vm1343, %v1345, %v1349
        %v1452 = vsel %vm1343, %v1410, %v1445
        %v1453 = vsel %vm1343, %v1446, 0.0
        %v1454 = vmul.f32 %v1346, %v1124
        %v1455 = vmul.f32 %v1451, %v1125
        %v1456 = vmul.f32 %v1351, %v1126
        %v1457 = vmul.f32 %v1353, %v1127
        %v1458 = vmul.f32 %v1355, %v1128
        %v1459 = vmul.f32 %v1357, %v1129
        %v1460 = vmul.f32 %v1359, %v1130
        %v1461 = vmul.f32 %v1361, %v1131
        %v1462 = vmul.f32 %v1363, %v1132
        %v1463 = vmul.f32 %v1365, %v1133
        %v1464 = vmul.f32 %v1367, %v1134
        %v1465 = vmul.f32 %v1369, %v1135
        %v1466 = vmul.f32 %v1371, %v1136
        %v1467 = vmul.f32 %v1373, %v1137
        %v1468 = vmul.f32 %v1375, %v1138
        %v1469 = vmul.f32 %v1377, %v1139
        %v1470 = vmul.f32 %v1379, %v1140
        %v1471 = vmul.f32 %v1381, %v1141
        %v1472 = vmul.f32 %v1383, %v1142
        %v1473 = vmul.f32 %v1385, %v1143
        %v1474 = vmul.f32 %v1387, %v1144
        %v1475 = vmul.f32 %v1389, %v1145
        %v1476 = vmul.f32 %v1391, %v1146
        %v1477 = vmul.f32 %v1393, %v1147
        %v1478 = vmul.f32 %v1395, %v1148
        %v1479 = vmul.f32 %v1397, %v1149
        %v1480 = vmul.f32 %v1399, %v1150
        %v1481 = vmul.f32 %v1401, %v1151
        %v1482 = vmul.f32 %v1403, %v1152
        %v1483 = vmul.f32 %v1405, %v1153
        %v1484 = vmul.f32 %v1407, %v1154
        %v1485 = vmul.f32 %v1409, %v1155
        %v1486 = vmul.f32 %v1411, %v1156
        %v1487 = vmul.f32 %v1452, %v1157
        %v1488 = vmul.f32 %v1447, %v1158
        %v1489 = vmul.f32 %v1453, %v1159
        %1490 = vrot.lane.b32.xlu0 %v437, 4
        %v1491 = vpop.permute.xlu0 %1490
        %1492 = vrot.lane.b32.xlu0 %v438, 4
        %v1493 = vpop.permute.xlu0 %1492
        %1494 = vrot.lane.b32.xlu0 %v443, 4
        %v1495 = vpop.permute.xlu0 %1494
        %1496 = vrot.lane.b32.xlu0 %v444, 4
        %v1497 = vpop.permute.xlu0 %1496
        %1498 = vrot.lane.b32.xlu0 %v445, 4
        %v1499 = vpop.permute.xlu0 %1498
        %1500 = vrot.lane.b32.xlu0 %v446, 4
        %v1501 = vpop.permute.xlu0 %1500
        %1502 = vrot.lane.b32.xlu0 %v447, 4
        %v1503 = vpop.permute.xlu0 %1502
        %1504 = vrot.lane.b32.xlu0 %v448, 4
        %v1505 = vpop.permute.xlu0 %1504
        %1506 = vrot.lane.b32.xlu0 %v449, 4
        %v1507 = vpop.permute.xlu0 %1506
        %1508 = vrot.lane.b32.xlu0 %v450, 4
        %v1509 = vpop.permute.xlu0 %1508
        %1510 = vrot.lane.b32.xlu0 %v451, 4
        %v1511 = vpop.permute.xlu0 %1510
        %1512 = vrot.lane.b32.xlu0 %v452, 4
        %v1513 = vpop.permute.xlu0 %1512
        %1514 = vrot.lane.b32.xlu0 %v453, 4
        %v1515 = vpop.permute.xlu0 %1514
        %1516 = vrot.lane.b32.xlu0 %v454, 4
        %v1517 = vpop.permute.xlu0 %1516
        %1518 = vrot.lane.b32.xlu0 %v455, 4
        %v1519 = vpop.permute.xlu0 %1518
        %1520 = vrot.lane.b32.xlu0 %v456, 4
        %v1521 = vpop.permute.xlu0 %1520
        %1522 = vrot.lane.b32.xlu0 %v457, 4
        %v1523 = vpop.permute.xlu0 %1522
        %1524 = vrot.lane.b32.xlu0 %v458, 4
        %v1525 = vpop.permute.xlu0 %1524
        %1526 = vrot.lane.b32.xlu0 %v459, 4
        %v1527 = vpop.permute.xlu0 %1526
        %1528 = vrot.lane.b32.xlu0 %v460, 4
        %v1529 = vpop.permute.xlu0 %1528
        %1530 = vrot.lane.b32.xlu0 %v461, 4
        %v1531 = vpop.permute.xlu0 %1530
        %1532 = vrot.lane.b32.xlu0 %v462, 4
        %v1533 = vpop.permute.xlu0 %1532
        %1534 = vrot.lane.b32.xlu0 %v463, 4
        %v1535 = vpop.permute.xlu0 %1534
        %1536 = vrot.lane.b32.xlu0 %v464, 4
        %v1537 = vpop.permute.xlu0 %1536
        %1538 = vrot.lane.b32.xlu0 %v465, 4
        %v1539 = vpop.permute.xlu0 %1538
        %1540 = vrot.lane.b32.xlu0 %v466, 4
        %v1541 = vpop.permute.xlu0 %1540
        %1542 = vrot.lane.b32.xlu0 %v467, 4
        %v1543 = vpop.permute.xlu0 %1542
        %1544 = vrot.lane.b32.xlu0 %v468, 4
        %v1545 = vpop.permute.xlu0 %1544
        %1546 = vrot.lane.b32.xlu0 %v469, 4
        %v1547 = vpop.permute.xlu0 %1546
        %1548 = vrot.lane.b32.xlu0 %v470, 4
        %v1549 = vpop.permute.xlu0 %1548
        %1550 = vrot.lane.b32.xlu0 %v471, 4
        %v1551 = vpop.permute.xlu0 %1550
        %1552 = vrot.lane.b32.xlu0 %v472, 4
        %v1553 = vpop.permute.xlu0 %1552
        %1554 = vrot.lane.b32.xlu0 %v473, 4
        %v1555 = vpop.permute.xlu0 %1554
        %1556 = vrot.lane.b32.xlu0 %v474, 4
        %v1557 = vpop.permute.xlu0 %1556
        %1558 = vrot.lane.b32.xlu0 %v441, 4
        %v1559 = vpop.permute.xlu0 %1558
        %1560 = vrot.lane.b32.xlu0 %v442, 4
        %v1561 = vpop.permute.xlu0 %1560
        %1634 = vrot.lane.b32.xlu0 %v1454, 8
        %v1635 = vpop.permute.xlu0 %1634
        %1636 = vrot.lane.b32.xlu0 %v1455, 8
        %v1637 = vpop.permute.xlu0 %1636
        %1638 = vrot.lane.b32.xlu0 %v1456, 8
        %v1639 = vpop.permute.xlu0 %1638
        %1640 = vrot.lane.b32.xlu0 %v1457, 8
        %v1641 = vpop.permute.xlu0 %1640
        %1642 = vrot.lane.b32.xlu0 %v1458, 8
        %v1643 = vpop.permute.xlu0 %1642
        %1644 = vrot.lane.b32.xlu0 %v1459, 8
        %v1645 = vpop.permute.xlu0 %1644
        %1646 = vrot.lane.b32.xlu0 %v1460, 8
        %v1647 = vpop.permute.xlu0 %1646
        %1648 = vrot.lane.b32.xlu0 %v1461, 8
        %v1649 = vpop.permute.xlu0 %1648
        %1650 = vrot.lane.b32.xlu0 %v1462, 8
        %v1651 = vpop.permute.xlu0 %1650
        %1652 = vrot.lane.b32.xlu0 %v1463, 8
        %v1653 = vpop.permute.xlu0 %1652
        %1654 = vrot.lane.b32.xlu0 %v1464, 8
        %v1655 = vpop.permute.xlu0 %1654
        %1656 = vrot.lane.b32.xlu0 %v1465, 8
        %v1657 = vpop.permute.xlu0 %1656
        %1658 = vrot.lane.b32.xlu0 %v1466, 8
        %v1659 = vpop.permute.xlu0 %1658
        %1660 = vrot.lane.b32.xlu0 %v1467, 8
        %v1661 = vpop.permute.xlu0 %1660
        %1662 = vrot.lane.b32.xlu0 %v1468, 8
        %v1663 = vpop.permute.xlu0 %1662
        %1664 = vrot.lane.b32.xlu0 %v1469, 8
        %v1665 = vpop.permute.xlu0 %1664
        %1666 = vrot.lane.b32.xlu0 %v1470, 8
        %v1667 = vpop.permute.xlu0 %1666
        %1668 = vrot.lane.b32.xlu0 %v1471, 8
        %v1669 = vpop.permute.xlu0 %1668
        %1670 = vrot.lane.b32.xlu0 %v1472, 8
        %v1671 = vpop.permute.xlu0 %1670
        %1672 = vrot.lane.b32.xlu0 %v1473, 8
        %v1673 = vpop.permute.xlu0 %1672
        %1674 = vrot.lane.b32.xlu0 %v1474, 8
        %v1675 = vpop.permute.xlu0 %1674
        %1676 = vrot.lane.b32.xlu0 %v1475, 8
        %v1677 = vpop.permute.xlu0 %1676
        %1678 = vrot.lane.b32.xlu0 %v1476, 8
        %v1679 = vpop.permute.xlu0 %1678
        %1680 = vrot.lane.b32.xlu0 %v1477, 8
        %v1681 = vpop.permute.xlu0 %1680
        %1682 = vrot.lane.b32.xlu0 %v1478, 8
        %v1683 = vpop.permute.xlu0 %1682
        %1684 = vrot.lane.b32.xlu0 %v1479, 8
        %v1685 = vpop.permute.xlu0 %1684
        %1686 = vrot.lane.b32.xlu0 %v1480, 8
        %v1687 = vpop.permute.xlu0 %1686
        %1688 = vrot.lane.b32.xlu0 %v1481, 8
        %v1689 = vpop.permute.xlu0 %1688
        %1690 = vrot.lane.b32.xlu0 %v1482, 8
        %v1691 = vpop.permute.xlu0 %1690
        %1692 = vrot.lane.b32.xlu0 %v1483, 8
        %v1693 = vpop.permute.xlu0 %1692
        %1694 = vrot.lane.b32.xlu0 %v1484, 8
        %v1695 = vpop.permute.xlu0 %1694
        %1696 = vrot.lane.b32.xlu0 %v1485, 8
        %v1697 = vpop.permute.xlu0 %1696
        %1698 = vrot.lane.b32.xlu0 %v1486, 8
        %v1699 = vpop.permute.xlu0 %1698
        %1700 = vrot.lane.b32.xlu0 %v1487, 8
        %v1701 = vpop.permute.xlu0 %1700
        %1702 = vrot.lane.b32.xlu0 %v1488, 8
        %v1703 = vpop.permute.xlu0 %1702
        %1704 = vrot.lane.b32.xlu0 %v1489, 8
        %v1705 = vpop.permute.xlu0 %1704
        %vm1742 = vcmask 31744
        %v1743 = vsel %vm1742, %v1307, %v1491
        %v1744 = vsel %vm1742, %v1308, %v1493
        %v1745 = vsel %vm1742, %v1309, %v1495
        %v1746 = vsel %vm1742, %v1310, %v1497
        %v1747 = vsel %vm1742, %v1311, %v1499
        %v1748 = vsel %vm1742, %v1312, %v1501
        %v1749 = vsel %vm1742, %v1313, %v1503
        %v1750 = vsel %vm1742, %v1314, %v1505
        %v1751 = vsel %vm1742, %v1315, %v1507
        %v1752 = vsel %vm1742, %v1316, %v1509
        %v1753 = vsel %vm1742, %v1317, %v1511
        %v1754 = vsel %vm1742, %v1318, %v1513
        %v1755 = vsel %vm1742, %v1319, %v1515
        %v1756 = vsel %vm1742, %v1320, %v1517
        %v1757 = vsel %vm1742, %v1321, %v1519
        %v1758 = vsel %vm1742, %v1322, %v1521
        %v1759 = vsel %vm1742, %v1323, %v1523
        %v1760 = vsel %vm1742, %v1324, %v1525
        %v1761 = vsel %vm1742, %v1325, %v1527
        %v1762 = vsel %vm1742, %v1326, %v1529
        %v1763 = vsel %vm1742, %v1327, %v1531
        %v1764 = vsel %vm1742, %v1328, %v1533
        %v1765 = vsel %vm1742, %v1329, %v1535
        %v1766 = vsel %vm1742, %v1330, %v1537
        %v1767 = vsel %vm1742, %v1331, %v1539
        %v1768 = vsel %vm1742, %v1332, %v1541
        %v1769 = vsel %vm1742, %v1333, %v1543
        %v1770 = vsel %vm1742, %v1334, %v1545
        %v1771 = vsel %vm1742, %v1335, %v1547
        %v1772 = vsel %vm1742, %v1336, %v1549
        %v1773 = vsel %vm1742, %v1337, %v1551
        %v1774 = vsel %vm1742, %v1338, %v1553
        %v1775 = vsel %vm1742, %v1339, %v1555
        %v1776 = vsel %vm1742, %v1340, %v1557
        %v1777 = vsel %vm1742, %v1341, %v1559
        %v1778 = vsel %vm1742, %v1342, %v1561
        %vm1779 = vcmask 64512
        %v1780 = vsel %vm1779, %v1743, %v1635
        %v1781 = vsel %vm1779, %v1744, %v1637
        %v1782 = vsel %vm1779, %v1745, %v1639
        %v1783 = vsel %vm1779, %v1746, %v1641
        %v1784 = vsel %vm1779, %v1747, %v1643
        %v1785 = vsel %vm1779, %v1748, %v1645
        %v1786 = vsel %vm1779, %v1749, %v1647
        %v1787 = vsel %vm1779, %v1750, %v1649
        %v1788 = vsel %vm1779, %v1751, %v1651
        %v1789 = vsel %vm1779, %v1752, %v1653
        %v1790 = vsel %vm1779, %v1753, %v1655
        %v1791 = vsel %vm1779, %v1754, %v1657
        %v1792 = vsel %vm1779, %v1755, %v1659
        %v1793 = vsel %vm1779, %v1756, %v1661
        %v1794 = vsel %vm1779, %v1757, %v1663
        %v1795 = vsel %vm1779, %v1758, %v1665
        %v1796 = vsel %vm1779, %v1759, %v1667
        %v1797 = vsel %vm1779, %v1760, %v1669
        %v1798 = vsel %vm1779, %v1761, %v1671
        %v1799 = vsel %vm1779, %v1762, %v1673
        %v1800 = vsel %vm1779, %v1763, %v1675
        %v1801 = vsel %vm1779, %v1764, %v1677
        %v1802 = vsel %vm1779, %v1765, %v1679
        %v1803 = vsel %vm1779, %v1766, %v1681
        %v1804 = vsel %vm1779, %v1767, %v1683
        %v1805 = vsel %vm1779, %v1768, %v1685
        %v1806 = vsel %vm1779, %v1769, %v1687
        %v1807 = vsel %vm1779, %v1770, %v1689
        %v1808 = vsel %vm1779, %v1771, %v1691
        %v1809 = vsel %vm1779, %v1772, %v1693
        %v1810 = vsel %vm1779, %v1773, %v1695
        %v1811 = vsel %vm1779, %v1774, %v1697
        %v1812 = vsel %vm1779, %v1775, %v1699
        %v1813 = vsel %vm1779, %v1776, %v1701
        %v1814 = vsel %vm1779, %v1777, %v1703
        %v1815 = vsel %vm1779, %v1778, %v1705
        %v1816 = vld [vmem:[%s3] sm:$0xff]
        %v1817 = vld [vmem:[%s3 + $0x8] sm:$0xf]
        %s1818 = scalar_lea.vmem %s3, 16
        %v1819 = vld [vmem:[%s1818] sm:$0xff]
        %v1820 = vld [vmem:[%s1818 + $0x8] sm:$0xf]
        %vm1821 = vcmask 97280
        %v1823 = vsel %vm1821, %v1782, 0
        %v1826 = vsel %vm1821, %v1783, 0
        %v1829 = vsel %vm1821, %v1784, 0
        %v1832 = vsel %vm1821, %v1785, 0
        %v1835 = vsel %vm1821, %v1786, 0
        %v1838 = vsel %vm1821, %v1787, 0
        %v1841 = vsel %vm1821, %v1788, 0
        %v1844 = vsel %vm1821, %v1789, 0
        %v1847 = vsel %vm1821, %v1790, 0
        %v1850 = vsel %vm1821, %v1791, 0
        %v1853 = vsel %vm1821, %v1792, 0
        %v1856 = vsel %vm1821, %v1793, 0
        %v1859 = vsel %vm1821, %v1794, 0
        %v1862 = vsel %vm1821, %v1795, 0
        %v1865 = vsel %vm1821, %v1796, 0
        %v1868 = vsel %vm1821, %v1797, 0
        %v1871 = vsel %vm1821, %v1798, 0
        %v1874 = vsel %vm1821, %v1799, 0
        %v1877 = vsel %vm1821, %v1800, 0
        %v1880 = vsel %vm1821, %v1801, 0
        %v1883 = vsel %vm1821, %v1802, 0
        %v1886 = vsel %vm1821, %v1803, 0
        %v1889 = vsel %vm1821, %v1804, 0
        %v1892 = vsel %vm1821, %v1805, 0
        %v1895 = vsel %vm1821, %v1806, 0
        %v1898 = vsel %vm1821, %v1807, 0
        %v1901 = vsel %vm1821, %v1808, 0
        %v1904 = vsel %vm1821, %v1809, 0
        %v1907 = vsel %vm1821, %v1810, 0
        %v1910 = vsel %vm1821, %v1811, 0
        %v1913 = vsel %vm1821, %v1812, 0
        %v1916 = vsel %vm1821, %v1813, 0
        %vm1918 = vcmask 1043456
        %v1920 = vsel %vm1918, %v1820, 0
        %1922 = vmatprep.subr.mxu0 0.0
        %1923 = vmatpush1.msra.mxu0 %v1819
        %1924 = vmatprep.subr.mxu0 0.0
        %1925 = vmatpush1.msra.mxu0 %v1920
        %1926 = vmatprep.subr.mxu0 0.0
        %1927 = vmatpush1.msra.mxu0 0.0
        %1928 = vmatprep.subr.mxu0 0.0
        %1929 = vmatpush1.msra.mxu0 0.0
        %1930 = vmatprep.subr.mxu0 0.0
        %1931 = vmatpush1.msra.mxu0 0.0
        %1932 = vmatprep.subr.mxu0 0.0
        %1933 = vmatpush1.msra.mxu0 0.0
        %1934 = vmatprep.subr.mxu0 0.0
        %1935 = vmatpush1.msra.mxu0 0.0
        %1936 = vmatprep.subr.mxu0 0.0
        %1937 = vmatpush1.msra.mxu0 0.0
        %1938 = vmatprep.subr.mxu0 0.0
        %1939 = vmatpush1.msra.mxu0 0.0
        %1940 = vmatprep.subr.mxu0 0.0
        %1941 = vmatpush1.msra.mxu0 0.0
        %1942 = vmatprep.subr.mxu0 0.0
        %1943 = vmatpush1.msra.mxu0 0.0
        %1944 = vmatprep.subr.mxu0 0.0
        %1945 = vmatpush1.msra.mxu0 0.0
        %1946 = vmatprep.subr.mxu0 0.0
        %1947 = vmatpush1.msra.mxu0 0.0
        %1948 = vmatprep.subr.mxu0 0.0
        %1949 = vmatpush1.msra.mxu0 0.0
        %1950 = vmatprep.subr.mxu0 0.0
        %1951 = vmatpush1.msra.mxu0 0.0
        %1952 = vmatprep.subr.mxu0 0.0
        %1953 = vmatpush1.msra.mxu0 0.0
        %1954 = vmatprep.subr.mxu0 0.0
        %1955 = vmatpush1.msra.mxu0 0.0
        %1956 = vmatprep.subr.mxu0 0.0
        %1957 = vmatpush1.msra.mxu0 0.0
        %1958 = vmatprep.subr.mxu0 0.0
        %1959 = vmatpush1.msra.mxu0 0.0
        %1960 = vmatprep.subr.mxu0 0.0
        %1961 = vmatpush1.msra.mxu0 0.0
        %1962 = vmatprep.subr.mxu0 0.0
        %1963 = vmatpush1.msra.mxu0 0.0
        %1964 = vmatprep.subr.mxu0 0.0
        %1965 = vmatpush1.msra.mxu0 0.0
        %1966 = vmatprep.subr.mxu0 0.0
        %1967 = vmatpush1.msra.mxu0 0.0
        %1968 = vmatprep.subr.mxu0 0.0
        %1969 = vmatpush1.msra.mxu0 0.0
        %1970 = vmatprep.subr.mxu0 0.0
        %1971 = vmatpush1.msra.mxu0 0.0
        %1972 = vmatprep.subr.mxu0 0.0
        %1973 = vmatpush1.msra.mxu0 0.0
        %1974 = vmatprep.subr.mxu0 0.0
        %1975 = vmatpush1.msra.mxu0 0.0
        %1976 = vmatprep.subr.mxu0 0.0
        %1977 = vmatpush1.msra.mxu0 0.0
        %1978 = vmatprep.subr.mxu0 0.0
        %1979 = vmatpush1.msra.mxu0 0.0
        %1980 = vmatprep.subr.mxu0 0.0
        %1981 = vmatpush1.msra.mxu0 0.0
        %1982 = vmatprep.subr.mxu0 0.0
        %1983 = vmatpush1.msra.mxu0 0.0
        %1984 = vmatprep.subr.mxu0 0.0
        %1985 = vmatpush1.msra.mxu0 0.0
        %1986 = vmatprep.mubr.f32.mxu0 0.0
        %1987 = vmatmul.mubr.f32.gmra.mrb[0].mxu0 %v1823
        %v1988 = vpop.f32.mrb[0].mxu0
        %v1989 = vadd.f32 0.0, %v1988
        %v1990 = vpop.f32.mrb[0].mxu0
        %1991 = vmatprep.mubr.f32.mxu0 0.0
        %1992 = vmatmul.mubr.f32.gmra.mrb[0].mxu0 %v1826
        %v1993 = vpop.f32.mrb[0].mxu0
        %v1994 = vadd.f32 0.0, %v1993
        %v1995 = vpop.f32.mrb[0].mxu0
        %1996 = vmatprep.mubr.f32.mxu0 0.0
        %1997 = vmatmul.mubr.f32.gmra.mrb[0].mxu0 %v1829
        %v1998 = vpop.f32.mrb[0].mxu0
        %v1999 = vadd.f32 0.0, %v1998
        %v2000 = vpop.f32.mrb[0].mxu0
        %2001 = vmatprep.mubr.f32.mxu0 0.0
        %2002 = vmatmul.mubr.f32.gmra.mrb[0].mxu0 %v1832
        %v2003 = vpop.f32.mrb[0].mxu0
        %v2004 = vadd.f32 0.0, %v2003
        %v2005 = vpop.f32.mrb[0].mxu0
        %2006 = vmatprep.mubr.f32.mxu0 0.0
        %2007 = vmatmul.mubr.f32.gmra.mrb[0].mxu0 %v1835
        %v2008 = vpop.f32.mrb[0].mxu0
        %v2009 = vadd.f32 0.0, %v2008
        %v2010 = vpop.f32.mrb[0].mxu0
        %2011 = vmatprep.mubr.f32.mxu0 0.0
        %2012 = vmatmul.mubr.f32.gmra.mrb[0].mxu0 %v1838
        %v2013 = vpop.f32.mrb[0].mxu0
        %v2014 = vadd.f32 0.0, %v2013
        %v2015 = vpop.f32.mrb[0].mxu0
        %2016 = vmatprep.mubr.f32.mxu0 0.0
        %2017 = vmatmul.mubr.f32.gmra.mrb[0].mxu0 %v1841
        %v2018 = vpop.f32.mrb[0].mxu0
        %v2019 = vadd.f32 0.0, %v2018
        %v2020 = vpop.f32.mrb[0].mxu0
        %2021 = vmatprep.mubr.f32.mxu0 0.0
        %2022 = vmatmul.mubr.f32.gmra.mrb[0].mxu0 %v1844
        %v2023 = vpop.f32.mrb[0].mxu0
        %v2024 = vadd.f32 0.0, %v2023
        %v2025 = vpop.f32.mrb[0].mxu0
        %2026 = vmatprep.mubr.f32.mxu0 0.0
        %2027 = vmatmul.mubr.f32.gmra.mrb[0].mxu0 %v1847
        %v2028 = vpop.f32.mrb[0].mxu0
        %v2029 = vadd.f32 0.0, %v2028
        %v2030 = vpop.f32.mrb[0].mxu0
        %2031 = vmatprep.mubr.f32.mxu0 0.0
        %2032 = vmatmul.mubr.f32.gmra.mrb[0].mxu0 %v1850
        %v2033 = vpop.f32.mrb[0].mxu0
        %v2034 = vadd.f32 0.0, %v2033
        %v2035 = vpop.f32.mrb[0].mxu0
        %2036 = vmatprep.mubr.f32.mxu0 0.0
        %2037 = vmatmul.mubr.f32.gmra.mrb[0].mxu0 %v1853
        %v2038 = vpop.f32.mrb[0].mxu0
        %v2039 = vadd.f32 0.0, %v2038
        %v2040 = vpop.f32.mrb[0].mxu0
        %2041 = vmatprep.mubr.f32.mxu0 0.0
        %2042 = vmatmul.mubr.f32.gmra.mrb[0].mxu0 %v1856
        %v2043 = vpop.f32.mrb[0].mxu0
        %v2044 = vadd.f32 0.0, %v2043
        %v2045 = vpop.f32.mrb[0].mxu0
        %2046 = vmatprep.mubr.f32.mxu0 0.0
        %2047 = vmatmul.mubr.f32.gmra.mrb[0].mxu0 %v1859
        %v2048 = vpop.f32.mrb[0].mxu0
        %v2049 = vadd.f32 0.0, %v2048
        %v2050 = vpop.f32.mrb[0].mxu0
        %2051 = vmatprep.mubr.f32.mxu0 0.0
        %2052 = vmatmul.mubr.f32.gmra.mrb[0].mxu0 %v1862
        %v2053 = vpop.f32.mrb[0].mxu0
        %v2054 = vadd.f32 0.0, %v2053
        %v2055 = vpop.f32.mrb[0].mxu0
        %2056 = vmatprep.mubr.f32.mxu0 0.0
        %2057 = vmatmul.mubr.f32.gmra.mrb[0].mxu0 %v1865
        %v2058 = vpop.f32.mrb[0].mxu0
        %v2059 = vadd.f32 0.0, %v2058
        %v2060 = vpop.f32.mrb[0].mxu0
        %2061 = vmatprep.mubr.f32.mxu0 0.0
        %2062 = vmatmul.mubr.f32.gmra.mrb[0].mxu0 %v1868
        %v2063 = vpop.f32.mrb[0].mxu0
        %v2064 = vadd.f32 0.0, %v2063
        %v2065 = vpop.f32.mrb[0].mxu0
        %2066 = vmatprep.mubr.f32.mxu0 0.0
        %2067 = vmatmul.mubr.f32.gmra.mrb[0].mxu0 %v1871
        %v2068 = vpop.f32.mrb[0].mxu0
        %v2069 = vadd.f32 0.0, %v2068
        %v2070 = vpop.f32.mrb[0].mxu0
        %2071 = vmatprep.mubr.f32.mxu0 0.0
        %2072 = vmatmul.mubr.f32.gmra.mrb[0].mxu0 %v1874
        %v2073 = vpop.f32.mrb[0].mxu0
        %v2074 = vadd.f32 0.0, %v2073
        %v2075 = vpop.f32.mrb[0].mxu0
        %2076 = vmatprep.mubr.f32.mxu0 0.0
        %2077 = vmatmul.mubr.f32.gmra.mrb[0].mxu0 %v1877
        %v2078 = vpop.f32.mrb[0].mxu0
        %v2079 = vadd.f32 0.0, %v2078
        %v2080 = vpop.f32.mrb[0].mxu0
        %2081 = vmatprep.mubr.f32.mxu0 0.0
        %2082 = vmatmul.mubr.f32.gmra.mrb[0].mxu0 %v1880
        %v2083 = vpop.f32.mrb[0].mxu0
        %v2084 = vadd.f32 0.0, %v2083
        %v2085 = vpop.f32.mrb[0].mxu0
        %2086 = vmatprep.mubr.f32.mxu0 0.0
        %2087 = vmatmul.mubr.f32.gmra.mrb[0].mxu0 %v1883
        %v2088 = vpop.f32.mrb[0].mxu0
        %v2089 = vadd.f32 0.0, %v2088
        %v2090 = vpop.f32.mrb[0].mxu0
        %2091 = vmatprep.mubr.f32.mxu0 0.0
        %2092 = vmatmul.mubr.f32.gmra.mrb[0].mxu0 %v1886
        %v2093 = vpop.f32.mrb[0].mxu0
        %v2094 = vadd.f32 0.0, %v2093
        %v2095 = vpop.f32.mrb[0].mxu0
        %2096 = vmatprep.mubr.f32.mxu0 0.0
        %2097 = vmatmul.mubr.f32.gmra.mrb[0].mxu0 %v1889
        %v2098 = vpop.f32.mrb[0].mxu0
        %v2099 = vadd.f32 0.0, %v2098
        %v2100 = vpop.f32.mrb[0].mxu0
        %2101 = vmatprep.mubr.f32.mxu0 0.0
        %2102 = vmatmul.mubr.f32.gmra.mrb[0].mxu0 %v1892
        %v2103 = vpop.f32.mrb[0].mxu0
        %v2104 = vadd.f32 0.0, %v2103
        %v2105 = vpop.f32.mrb[0].mxu0
        %2106 = vmatprep.mubr.f32.mxu0 0.0
        %2107 = vmatmul.mubr.f32.gmra.mrb[0].mxu0 %v1895
        %v2108 = vpop.f32.mrb[0].mxu0
        %v2109 = vadd.f32 0.0, %v2108
        %v2110 = vpop.f32.mrb[0].mxu0
        %2111 = vmatprep.mubr.f32.mxu0 0.0
        %2112 = vmatmul.mubr.f32.gmra.mrb[0].mxu0 %v1898
        %v2113 = vpop.f32.mrb[0].mxu0
        %v2114 = vadd.f32 0.0, %v2113
        %v2115 = vpop.f32.mrb[0].mxu0
        %2116 = vmatprep.mubr.f32.mxu0 0.0
        %2117 = vmatmul.mubr.f32.gmra.mrb[0].mxu0 %v1901
        %v2118 = vpop.f32.mrb[0].mxu0
        %v2119 = vadd.f32 0.0, %v2118
        %v2120 = vpop.f32.mrb[0].mxu0
        %2121 = vmatprep.mubr.f32.mxu0 0.0
        %2122 = vmatmul.mubr.f32.gmra.mrb[0].mxu0 %v1904
        %v2123 = vpop.f32.mrb[0].mxu0
        %v2124 = vadd.f32 0.0, %v2123
        %v2125 = vpop.f32.mrb[0].mxu0
        %2126 = vmatprep.mubr.f32.mxu0 0.0
        %2127 = vmatmul.mubr.f32.gmra.mrb[0].mxu0 %v1907
        %v2128 = vpop.f32.mrb[0].mxu0
        %v2129 = vadd.f32 0.0, %v2128
        %v2130 = vpop.f32.mrb[0].mxu0
        %2131 = vmatprep.mubr.f32.mxu0 0.0
        %2132 = vmatmul.mubr.f32.gmra.mrb[0].mxu0 %v1910
        %v2133 = vpop.f32.mrb[0].mxu0
        %v2134 = vadd.f32 0.0, %v2133
        %v2135 = vpop.f32.mrb[0].mxu0
        %2136 = vmatprep.mubr.f32.mxu0 0.0
        %2137 = vmatmul.mubr.f32.gmra.mrb[0].mxu0 %v1913
        %v2138 = vpop.f32.mrb[0].mxu0
        %v2139 = vadd.f32 0.0, %v2138
        %v2140 = vpop.f32.mrb[0].mxu0
        %2141 = vmatprep.mubr.f32.mxu0 0.0
        %2142 = vmatmul.mubr.f32.gmra.mrb[0].mxu0 %v1916
        %v2143 = vpop.f32.mrb[0].mxu0
        %v2144 = vadd.f32 0.0, %v2143
        %v2145 = vpop.f32.mrb[0].mxu0
        %2146 = vdwg.mxu0
        %v2148 = vsel %vm1821, %v1780, 0
        %v2151 = vsel %vm1821, %v1781, 0
        %v2154 = vsel %vm1918, %v1817, 0
        %2156 = vmatprep.subr.mxu0 0.0
        %2157 = vmatpush1.msra.mxu0 %v1816
        %2158 = vmatprep.subr.mxu0 0.0
        %2159 = vmatpush1.msra.mxu0 %v2154
        %2160 = vmatprep.subr.mxu0 0.0
        %2161 = vmatpush1.msra.mxu0 0.0
        %2162 = vmatprep.subr.mxu0 0.0
        %2163 = vmatpush1.msra.mxu0 0.0
        %2164 = vmatprep.subr.mxu0 0.0
        %2165 = vmatpush1.msra.mxu0 0.0
        %2166 = vmatprep.subr.mxu0 0.0
        %2167 = vmatpush1.msra.mxu0 0.0
        %2168 = vmatprep.subr.mxu0 0.0
        %2169 = vmatpush1.msra.mxu0 0.0
        %2170 = vmatprep.subr.mxu0 0.0
        %2171 = vmatpush1.msra.mxu0 0.0
        %2172 = vmatprep.subr.mxu0 0.0
        %2173 = vmatpush1.msra.mxu0 0.0
        %2174 = vmatprep.subr.mxu0 0.0
        %2175 = vmatpush1.msra.mxu0 0.0
        %2176 = vmatprep.subr.mxu0 0.0
        %2177 = vmatpush1.msra.mxu0 0.0
        %2178 = vmatprep.subr.mxu0 0.0
        %2179 = vmatpush1.msra.mxu0 0.0
        %2180 = vmatprep.subr.mxu0 0.0
        %2181 = vmatpush1.msra.mxu0 0.0
        %2182 = vmatprep.subr.mxu0 0.0
        %2183 = vmatpush1.msra.mxu0 0.0
        %2184 = vmatprep.subr.mxu0 0.0
        %2185 = vmatpush1.msra.mxu0 0.0
        %2186 = vmatprep.subr.mxu0 0.0
        %2187 = vmatpush1.msra.mxu0 0.0
        %2188 = vmatprep.subr.mxu0 0.0
        %2189 = vmatpush1.msra.mxu0 0.0
        %2190 = vmatprep.subr.mxu0 0.0
        %2191 = vmatpush1.msra.mxu0 0.0
        %2192 = vmatprep.subr.mxu0 0.0
        %2193 = vmatpush1.msra.mxu0 0.0
        %2194 = vmatprep.subr.mxu0 0.0
        %2195 = vmatpush1.msra.mxu0 0.0
        %2196 = vmatprep.subr.mxu0 0.0
        %2197 = vmatpush1.msra.mxu0 0.0
        %2198 = vmatprep.subr.mxu0 0.0
        %2199 = vmatpush1.msra.mxu0 0.0
        %2200 = vmatprep.subr.mxu0 0.0
        %2201 = vmatpush1.msra.mxu0 0.0
        %2202 = vmatprep.subr.mxu0 0.0
        %2203 = vmatpush1.msra.mxu0 0.0
        %2204 = vmatprep.subr.mxu0 0.0
        %2205 = vmatpush1.msra.mxu0 0.0
        %2206 = vmatprep.subr.mxu0 0.0
        %2207 = vmatpush1.msra.mxu0 0.0
        %2208 = vmatprep.subr.mxu0 0.0
        %2209 = vmatpush1.msra.mxu0 0.0
        %2210 = vmatprep.subr.mxu0 0.0
        %2211 = vmatpush1.msra.mxu0 0.0
        %2212 = vmatprep.subr.mxu0 0.0
        %2213 = vmatpush1.msra.mxu0 0.0
        %2214 = vmatprep.subr.mxu0 0.0
        %2215 = vmatpush1.msra.mxu0 0.0
        %2216 = vmatprep.subr.mxu0 0.0
        %2217 = vmatpush1.msra.mxu0 0.0
        %2218 = vmatprep.subr.mxu0 0.0
        %2219 = vmatpush1.msra.mxu0 0.0
        %2220 = vmatprep.mubr.f32.mxu0 0.0
        %2221 = vmatmul.mubr.f32.gmra.mrb[0].mxu0 %v2148
        %v2222 = vpop.f32.mrb[0].mxu0
        %v2223 = vadd.f32 %v1989, %v2222
        %v2224 = vpop.f32.mrb[0].mxu0
        %2225 = vmatprep.mubr.f32.mxu0 0.0
        %2226 = vmatmul.mubr.f32.gmra.mrb[0].mxu0 %v2151
        %v2227 = vpop.f32.mrb[0].mxu0
        %v2228 = vadd.f32 %v1994, %v2227
        %v2229 = vpop.f32.mrb[0].mxu0
        %2230 = vmatprep.mubr.f32.mxu0 0.0
        %2231 = vmatmul.mubr.f32.gmra.mrb[0].mxu0 %v1823
        %v2232 = vpop.f32.mrb[0].mxu0
        %v2233 = vadd.f32 %v1999, %v2232
        %v2234 = vpop.f32.mrb[0].mxu0
        %2235 = vmatprep.mubr.f32.mxu0 0.0
        %2236 = vmatmul.mubr.f32.gmra.mrb[0].mxu0 %v1826
        %v2237 = vpop.f32.mrb[0].mxu0
        %v2238 = vadd.f32 %v2004, %v2237
        %v2239 = vpop.f32.mrb[0].mxu0
        %2240 = vmatprep.mubr.f32.mxu0 0.0
        %2241 = vmatmul.mubr.f32.gmra.mrb[0].mxu0 %v1829
        %v2242 = vpop.f32.mrb[0].mxu0
        %v2243 = vadd.f32 %v2009, %v2242
        %v2244 = vpop.f32.mrb[0].mxu0
        %2245 = vmatprep.mubr.f32.mxu0 0.0
        %2246 = vmatmul.mubr.f32.gmra.mrb[0].mxu0 %v1832
        %v2247 = vpop.f32.mrb[0].mxu0
        %v2248 = vadd.f32 %v2014, %v2247
        %v2249 = vpop.f32.mrb[0].mxu0
        %2250 = vmatprep.mubr.f32.mxu0 0.0
        %2251 = vmatmul.mubr.f32.gmra.mrb[0].mxu0 %v1835
        %v2252 = vpop.f32.mrb[0].mxu0
        %v2253 = vadd.f32 %v2019, %v2252
        %v2254 = vpop.f32.mrb[0].mxu0
        %2255 = vmatprep.mubr.f32.mxu0 0.0
        %2256 = vmatmul.mubr.f32.gmra.mrb[0].mxu0 %v1838
        %v2257 = vpop.f32.mrb[0].mxu0
        %v2258 = vadd.f32 %v2024, %v2257
        %v2259 = vpop.f32.mrb[0].mxu0
        %2260 = vmatprep.mubr.f32.mxu0 0.0
        %2261 = vmatmul.mubr.f32.gmra.mrb[0].mxu0 %v1841
        %v2262 = vpop.f32.mrb[0].mxu0
        %v2263 = vadd.f32 %v2029, %v2262
        %v2264 = vpop.f32.mrb[0].mxu0
        %2265 = vmatprep.mubr.f32.mxu0 0.0
        %2266 = vmatmul.mubr.f32.gmra.mrb[0].mxu0 %v1844
        %v2267 = vpop.f32.mrb[0].mxu0
        %v2268 = vadd.f32 %v2034, %v2267
        %v2269 = vpop.f32.mrb[0].mxu0
        %2270 = vmatprep.mubr.f32.mxu0 0.0
        %2271 = vmatmul.mubr.f32.gmra.mrb[0].mxu0 %v1847
        %v2272 = vpop.f32.mrb[0].mxu0
        %v2273 = vadd.f32 %v2039, %v2272
        %v2274 = vpop.f32.mrb[0].mxu0
        %2275 = vmatprep.mubr.f32.mxu0 0.0
        %2276 = vmatmul.mubr.f32.gmra.mrb[0].mxu0 %v1850
        %v2277 = vpop.f32.mrb[0].mxu0
        %v2278 = vadd.f32 %v2044, %v2277
        %v2279 = vpop.f32.mrb[0].mxu0
        %2280 = vmatprep.mubr.f32.mxu0 0.0
        %2281 = vmatmul.mubr.f32.gmra.mrb[0].mxu0 %v1853
        %v2282 = vpop.f32.mrb[0].mxu0
        %v2283 = vadd.f32 %v2049, %v2282
        %v2284 = vpop.f32.mrb[0].mxu0
        %2285 = vmatprep.mubr.f32.mxu0 0.0
        %2286 = vmatmul.mubr.f32.gmra.mrb[0].mxu0 %v1856
        %v2287 = vpop.f32.mrb[0].mxu0
        %v2288 = vadd.f32 %v2054, %v2287
        %v2289 = vpop.f32.mrb[0].mxu0
        %2290 = vmatprep.mubr.f32.mxu0 0.0
        %2291 = vmatmul.mubr.f32.gmra.mrb[0].mxu0 %v1859
        %v2292 = vpop.f32.mrb[0].mxu0
        %v2293 = vadd.f32 %v2059, %v2292
        %v2294 = vpop.f32.mrb[0].mxu0
        %2295 = vmatprep.mubr.f32.mxu0 0.0
        %2296 = vmatmul.mubr.f32.gmra.mrb[0].mxu0 %v1862
        %v2297 = vpop.f32.mrb[0].mxu0
        %v2298 = vadd.f32 %v2064, %v2297
        %v2299 = vpop.f32.mrb[0].mxu0
        %2300 = vmatprep.mubr.f32.mxu0 0.0
        %2301 = vmatmul.mubr.f32.gmra.mrb[0].mxu0 %v1865
        %v2302 = vpop.f32.mrb[0].mxu0
        %v2303 = vadd.f32 %v2069, %v2302
        %v2304 = vpop.f32.mrb[0].mxu0
        %2305 = vmatprep.mubr.f32.mxu0 0.0
        %2306 = vmatmul.mubr.f32.gmra.mrb[0].mxu0 %v1868
        %v2307 = vpop.f32.mrb[0].mxu0
        %v2308 = vadd.f32 %v2074, %v2307
        %v2309 = vpop.f32.mrb[0].mxu0
        %2310 = vmatprep.mubr.f32.mxu0 0.0
        %2311 = vmatmul.mubr.f32.gmra.mrb[0].mxu0 %v1871
        %v2312 = vpop.f32.mrb[0].mxu0
        %v2313 = vadd.f32 %v2079, %v2312
        %v2314 = vpop.f32.mrb[0].mxu0
        %2315 = vmatprep.mubr.f32.mxu0 0.0
        %2316 = vmatmul.mubr.f32.gmra.mrb[0].mxu0 %v1874
        %v2317 = vpop.f32.mrb[0].mxu0
        %v2318 = vadd.f32 %v2084, %v2317
        %v2319 = vpop.f32.mrb[0].mxu0
        %2320 = vmatprep.mubr.f32.mxu0 0.0
        %2321 = vmatmul.mubr.f32.gmra.mrb[0].mxu0 %v1877
        %v2322 = vpop.f32.mrb[0].mxu0
        %v2323 = vadd.f32 %v2089, %v2322
        %v2324 = vpop.f32.mrb[0].mxu0
        %2325 = vmatprep.mubr.f32.mxu0 0.0
        %2326 = vmatmul.mubr.f32.gmra.mrb[0].mxu0 %v1880
        %v2327 = vpop.f32.mrb[0].mxu0
        %v2328 = vadd.f32 %v2094, %v2327
        %v2329 = vpop.f32.mrb[0].mxu0
        %2330 = vmatprep.mubr.f32.mxu0 0.0
        %2331 = vmatmul.mubr.f32.gmra.mrb[0].mxu0 %v1883
        %v2332 = vpop.f32.mrb[0].mxu0
        %v2333 = vadd.f32 %v2099, %v2332
        %v2334 = vpop.f32.mrb[0].mxu0
        %2335 = vmatprep.mubr.f32.mxu0 0.0
        %2336 = vmatmul.mubr.f32.gmra.mrb[0].mxu0 %v1886
        %v2337 = vpop.f32.mrb[0].mxu0
        %v2338 = vadd.f32 %v2104, %v2337
        %v2339 = vpop.f32.mrb[0].mxu0
        %2340 = vmatprep.mubr.f32.mxu0 0.0
        %2341 = vmatmul.mubr.f32.gmra.mrb[0].mxu0 %v1889
        %v2342 = vpop.f32.mrb[0].mxu0
        %v2343 = vadd.f32 %v2109, %v2342
        %v2344 = vpop.f32.mrb[0].mxu0
        %2345 = vmatprep.mubr.f32.mxu0 0.0
        %2346 = vmatmul.mubr.f32.gmra.mrb[0].mxu0 %v1892
        %v2347 = vpop.f32.mrb[0].mxu0
        %v2348 = vadd.f32 %v2114, %v2347
        %v2349 = vpop.f32.mrb[0].mxu0
        %2350 = vmatprep.mubr.f32.mxu0 0.0
        %2351 = vmatmul.mubr.f32.gmra.mrb[0].mxu0 %v1895
        %v2352 = vpop.f32.mrb[0].mxu0
        %v2353 = vadd.f32 %v2119, %v2352
        %v2354 = vpop.f32.mrb[0].mxu0
        %2355 = vmatprep.mubr.f32.mxu0 0.0
        %2356 = vmatmul.mubr.f32.gmra.mrb[0].mxu0 %v1898
        %v2357 = vpop.f32.mrb[0].mxu0
        %v2358 = vadd.f32 %v2124, %v2357
        %v2359 = vpop.f32.mrb[0].mxu0
        %2360 = vmatprep.mubr.f32.mxu0 0.0
        %2361 = vmatmul.mubr.f32.gmra.mrb[0].mxu0 %v1901
        %v2362 = vpop.f32.mrb[0].mxu0
        %v2363 = vadd.f32 %v2129, %v2362
        %v2364 = vpop.f32.mrb[0].mxu0
        %2365 = vmatprep.mubr.f32.mxu0 0.0
        %2366 = vmatmul.mubr.f32.gmra.mrb[0].mxu0 %v1904
        %v2367 = vpop.f32.mrb[0].mxu0
        %v2368 = vadd.f32 %v2134, %v2367
        %v2369 = vpop.f32.mrb[0].mxu0
        %2370 = vmatprep.mubr.f32.mxu0 0.0
        %2371 = vmatmul.mubr.f32.gmra.mrb[0].mxu0 %v1907
        %v2372 = vpop.f32.mrb[0].mxu0
        %v2373 = vadd.f32 %v2139, %v2372
        %v2374 = vpop.f32.mrb[0].mxu0
        %2375 = vmatprep.mubr.f32.mxu0 0.0
        %2376 = vmatmul.mubr.f32.gmra.mrb[0].mxu0 %v1910
        %v2377 = vpop.f32.mrb[0].mxu0
        %v2378 = vadd.f32 %v2144, %v2377
        %v2379 = vpop.f32.mrb[0].mxu0
        %2380 = vdwg.mxu0
        %s2381 = scalar_lea.vmem %s3, 32
        %v2382 = vld [vmem:[%s2381] sm:$0xff]
        %v2383 = vld [vmem:[%s2381 + $0x8] sm:$0xf]
        %v2385 = vsel %vm1821, %v1814, 0
        %v2388 = vsel %vm1821, %v1815, 0
        %v2391 = vsel %vm1918, %v2383, 0
        %2393 = vmatprep.subr.mxu0 0.0
        %2394 = vmatpush1.msra.mxu0 %v2382
        %2395 = vmatprep.subr.mxu0 0.0
        %2396 = vmatpush1.msra.mxu0 %v2391
        %2397 = vmatprep.subr.mxu0 0.0
        %2398 = vmatpush1.msra.mxu0 0.0
        %2399 = vmatprep.subr.mxu0 0.0
        %2400 = vmatpush1.msra.mxu0 0.0
        %2401 = vmatprep.subr.mxu0 0.0
        %2402 = vmatpush1.msra.mxu0 0.0
        %2403 = vmatprep.subr.mxu0 0.0
        %2404 = vmatpush1.msra.mxu0 0.0
        %2405 = vmatprep.subr.mxu0 0.0
        %2406 = vmatpush1.msra.mxu0 0.0
        %2407 = vmatprep.subr.mxu0 0.0
        %2408 = vmatpush1.msra.mxu0 0.0
        %2409 = vmatprep.subr.mxu0 0.0
        %2410 = vmatpush1.msra.mxu0 0.0
        %2411 = vmatprep.subr.mxu0 0.0
        %2412 = vmatpush1.msra.mxu0 0.0
        %2413 = vmatprep.subr.mxu0 0.0
        %2414 = vmatpush1.msra.mxu0 0.0
        %2415 = vmatprep.subr.mxu0 0.0
        %2416 = vmatpush1.msra.mxu0 0.0
        %2417 = vmatprep.subr.mxu0 0.0
        %2418 = vmatpush1.msra.mxu0 0.0
        %2419 = vmatprep.subr.mxu0 0.0
        %2420 = vmatpush1.msra.mxu0 0.0
        %2421 = vmatprep.subr.mxu0 0.0
        %2422 = vmatpush1.msra.mxu0 0.0
        %2423 = vmatprep.subr.mxu0 0.0
        %2424 = vmatpush1.msra.mxu0 0.0
        %2425 = vmatprep.subr.mxu0 0.0
        %2426 = vmatpush1.msra.mxu0 0.0
        %2427 = vmatprep.subr.mxu0 0.0
        %2428 = vmatpush1.msra.mxu0 0.0
        %2429 = vmatprep.subr.mxu0 0.0
        %2430 = vmatpush1.msra.mxu0 0.0
        %2431 = vmatprep.subr.mxu0 0.0
        %2432 = vmatpush1.msra.mxu0 0.0
        %2433 = vmatprep.subr.mxu0 0.0
        %2434 = vmatpush1.msra.mxu0 0.0
        %2435 = vmatprep.subr.mxu0 0.0
        %2436 = vmatpush1.msra.mxu0 0.0
        %2437 = vmatprep.subr.mxu0 0.0
        %2438 = vmatpush1.msra.mxu0 0.0
        %2439 = vmatprep.subr.mxu0 0.0
        %2440 = vmatpush1.msra.mxu0 0.0
        %2441 = vmatprep.subr.mxu0 0.0
        %2442 = vmatpush1.msra.mxu0 0.0
        %2443 = vmatprep.subr.mxu0 0.0
        %2444 = vmatpush1.msra.mxu0 0.0
        %2445 = vmatprep.subr.mxu0 0.0
        %2446 = vmatpush1.msra.mxu0 0.0
        %2447 = vmatprep.subr.mxu0 0.0
        %2448 = vmatpush1.msra.mxu0 0.0
        %2449 = vmatprep.subr.mxu0 0.0
        %2450 = vmatpush1.msra.mxu0 0.0
        %2451 = vmatprep.subr.mxu0 0.0
        %2452 = vmatpush1.msra.mxu0 0.0
        %2453 = vmatprep.subr.mxu0 0.0
        %2454 = vmatpush1.msra.mxu0 0.0
        %2455 = vmatprep.subr.mxu0 0.0
        %2456 = vmatpush1.msra.mxu0 0.0
        %2457 = vmatprep.mubr.f32.mxu0 0.0
        %2458 = vmatmul.mubr.f32.gmra.mrb[0].mxu0 %v1829
        %v2459 = vpop.f32.mrb[0].mxu0
        %v2460 = vadd.f32 0.0, %v2459
        %v2461 = vpop.f32.mrb[0].mxu0
        %2462 = vmatprep.mubr.f32.mxu0 0.0
        %2463 = vmatmul.mubr.f32.gmra.mrb[0].mxu0 %v1832
        %v2464 = vpop.f32.mrb[0].mxu0
        %v2465 = vadd.f32 0.0, %v2464
        %v2466 = vpop.f32.mrb[0].mxu0
        %2467 = vmatprep.mubr.f32.mxu0 0.0
        %2468 = vmatmul.mubr.f32.gmra.mrb[0].mxu0 %v1835
        %v2469 = vpop.f32.mrb[0].mxu0
        %v2470 = vadd.f32 0.0, %v2469
        %v2471 = vpop.f32.mrb[0].mxu0
        %2472 = vmatprep.mubr.f32.mxu0 0.0
        %2473 = vmatmul.mubr.f32.gmra.mrb[0].mxu0 %v1838
        %v2474 = vpop.f32.mrb[0].mxu0
        %v2475 = vadd.f32 0.0, %v2474
        %v2476 = vpop.f32.mrb[0].mxu0
        %2477 = vmatprep.mubr.f32.mxu0 0.0
        %2478 = vmatmul.mubr.f32.gmra.mrb[0].mxu0 %v1841
        %v2479 = vpop.f32.mrb[0].mxu0
        %v2480 = vadd.f32 0.0, %v2479
        %v2481 = vpop.f32.mrb[0].mxu0
        %2482 = vmatprep.mubr.f32.mxu0 0.0
        %2483 = vmatmul.mubr.f32.gmra.mrb[0].mxu0 %v1844
        %v2484 = vpop.f32.mrb[0].mxu0
        %v2485 = vadd.f32 0.0, %v2484
        %v2486 = vpop.f32.mrb[0].mxu0
        %2487 = vmatprep.mubr.f32.mxu0 0.0
        %2488 = vmatmul.mubr.f32.gmra.mrb[0].mxu0 %v1847
        %v2489 = vpop.f32.mrb[0].mxu0
        %v2490 = vadd.f32 0.0, %v2489
        %v2491 = vpop.f32.mrb[0].mxu0
        %2492 = vmatprep.mubr.f32.mxu0 0.0
        %2493 = vmatmul.mubr.f32.gmra.mrb[0].mxu0 %v1850
        %v2494 = vpop.f32.mrb[0].mxu0
        %v2495 = vadd.f32 0.0, %v2494
        %v2496 = vpop.f32.mrb[0].mxu0
        %2497 = vmatprep.mubr.f32.mxu0 0.0
        %2498 = vmatmul.mubr.f32.gmra.mrb[0].mxu0 %v1853
        %v2499 = vpop.f32.mrb[0].mxu0
        %v2500 = vadd.f32 0.0, %v2499
        %v2501 = vpop.f32.mrb[0].mxu0
        %2502 = vmatprep.mubr.f32.mxu0 0.0
        %2503 = vmatmul.mubr.f32.gmra.mrb[0].mxu0 %v1856
        %v2504 = vpop.f32.mrb[0].mxu0
        %v2505 = vadd.f32 0.0, %v2504
        %v2506 = vpop.f32.mrb[0].mxu0
        %2507 = vmatprep.mubr.f32.mxu0 0.0
        %2508 = vmatmul.mubr.f32.gmra.mrb[0].mxu0 %v1859
        %v2509 = vpop.f32.mrb[0].mxu0
        %v2510 = vadd.f32 0.0, %v2509
        %v2511 = vpop.f32.mrb[0].mxu0
        %2512 = vmatprep.mubr.f32.mxu0 0.0
        %2513 = vmatmul.mubr.f32.gmra.mrb[0].mxu0 %v1862
        %v2514 = vpop.f32.mrb[0].mxu0
        %v2515 = vadd.f32 0.0, %v2514
        %v2516 = vpop.f32.mrb[0].mxu0
        %2517 = vmatprep.mubr.f32.mxu0 0.0
        %2518 = vmatmul.mubr.f32.gmra.mrb[0].mxu0 %v1865
        %v2519 = vpop.f32.mrb[0].mxu0
        %v2520 = vadd.f32 0.0, %v2519
        %v2521 = vpop.f32.mrb[0].mxu0
        %2522 = vmatprep.mubr.f32.mxu0 0.0
        %2523 = vmatmul.mubr.f32.gmra.mrb[0].mxu0 %v1868
        %v2524 = vpop.f32.mrb[0].mxu0
        %v2525 = vadd.f32 0.0, %v2524
        %v2526 = vpop.f32.mrb[0].mxu0
        %2527 = vmatprep.mubr.f32.mxu0 0.0
        %2528 = vmatmul.mubr.f32.gmra.mrb[0].mxu0 %v1871
        %v2529 = vpop.f32.mrb[0].mxu0
        %v2530 = vadd.f32 0.0, %v2529
        %v2531 = vpop.f32.mrb[0].mxu0
        %2532 = vmatprep.mubr.f32.mxu0 0.0
        %2533 = vmatmul.mubr.f32.gmra.mrb[0].mxu0 %v1874
        %v2534 = vpop.f32.mrb[0].mxu0
        %v2535 = vadd.f32 0.0, %v2534
        %v2536 = vpop.f32.mrb[0].mxu0
        %2537 = vmatprep.mubr.f32.mxu0 0.0
        %2538 = vmatmul.mubr.f32.gmra.mrb[0].mxu0 %v1877
        %v2539 = vpop.f32.mrb[0].mxu0
        %v2540 = vadd.f32 0.0, %v2539
        %v2541 = vpop.f32.mrb[0].mxu0
        %2542 = vmatprep.mubr.f32.mxu0 0.0
        %2543 = vmatmul.mubr.f32.gmra.mrb[0].mxu0 %v1880
        %v2544 = vpop.f32.mrb[0].mxu0
        %v2545 = vadd.f32 0.0, %v2544
        %v2546 = vpop.f32.mrb[0].mxu0
        %2547 = vmatprep.mubr.f32.mxu0 0.0
        %2548 = vmatmul.mubr.f32.gmra.mrb[0].mxu0 %v1883
        %v2549 = vpop.f32.mrb[0].mxu0
        %v2550 = vadd.f32 0.0, %v2549
        %v2551 = vpop.f32.mrb[0].mxu0
        %2552 = vmatprep.mubr.f32.mxu0 0.0
        %2553 = vmatmul.mubr.f32.gmra.mrb[0].mxu0 %v1886
        %v2554 = vpop.f32.mrb[0].mxu0
        %v2555 = vadd.f32 0.0, %v2554
        %v2556 = vpop.f32.mrb[0].mxu0
        %2557 = vmatprep.mubr.f32.mxu0 0.0
        %2558 = vmatmul.mubr.f32.gmra.mrb[0].mxu0 %v1889
        %v2559 = vpop.f32.mrb[0].mxu0
        %v2560 = vadd.f32 0.0, %v2559
        %v2561 = vpop.f32.mrb[0].mxu0
        %2562 = vmatprep.mubr.f32.mxu0 0.0
        %2563 = vmatmul.mubr.f32.gmra.mrb[0].mxu0 %v1892
        %v2564 = vpop.f32.mrb[0].mxu0
        %v2565 = vadd.f32 0.0, %v2564
        %v2566 = vpop.f32.mrb[0].mxu0
        %2567 = vmatprep.mubr.f32.mxu0 0.0
        %2568 = vmatmul.mubr.f32.gmra.mrb[0].mxu0 %v1895
        %v2569 = vpop.f32.mrb[0].mxu0
        %v2570 = vadd.f32 0.0, %v2569
        %v2571 = vpop.f32.mrb[0].mxu0
        %2572 = vmatprep.mubr.f32.mxu0 0.0
        %2573 = vmatmul.mubr.f32.gmra.mrb[0].mxu0 %v1898
        %v2574 = vpop.f32.mrb[0].mxu0
        %v2575 = vadd.f32 0.0, %v2574
        %v2576 = vpop.f32.mrb[0].mxu0
        %2577 = vmatprep.mubr.f32.mxu0 0.0
        %2578 = vmatmul.mubr.f32.gmra.mrb[0].mxu0 %v1901
        %v2579 = vpop.f32.mrb[0].mxu0
        %v2580 = vadd.f32 0.0, %v2579
        %v2581 = vpop.f32.mrb[0].mxu0
        %2582 = vmatprep.mubr.f32.mxu0 0.0
        %2583 = vmatmul.mubr.f32.gmra.mrb[0].mxu0 %v1904
        %v2584 = vpop.f32.mrb[0].mxu0
        %v2585 = vadd.f32 0.0, %v2584
        %v2586 = vpop.f32.mrb[0].mxu0
        %2587 = vmatprep.mubr.f32.mxu0 0.0
        %2588 = vmatmul.mubr.f32.gmra.mrb[0].mxu0 %v1907
        %v2589 = vpop.f32.mrb[0].mxu0
        %v2590 = vadd.f32 0.0, %v2589
        %v2591 = vpop.f32.mrb[0].mxu0
        %2592 = vmatprep.mubr.f32.mxu0 0.0
        %2593 = vmatmul.mubr.f32.gmra.mrb[0].mxu0 %v1910
        %v2594 = vpop.f32.mrb[0].mxu0
        %v2595 = vadd.f32 0.0, %v2594
        %v2596 = vpop.f32.mrb[0].mxu0
        %2597 = vmatprep.mubr.f32.mxu0 0.0
        %2598 = vmatmul.mubr.f32.gmra.mrb[0].mxu0 %v1913
        %v2599 = vpop.f32.mrb[0].mxu0
        %v2600 = vadd.f32 0.0, %v2599
        %v2601 = vpop.f32.mrb[0].mxu0
        %2602 = vmatprep.mubr.f32.mxu0 0.0
        %2603 = vmatmul.mubr.f32.gmra.mrb[0].mxu0 %v1916
        %v2604 = vpop.f32.mrb[0].mxu0
        %v2605 = vadd.f32 0.0, %v2604
        %v2606 = vpop.f32.mrb[0].mxu0
        %2607 = vmatprep.mubr.f32.mxu0 0.0
        %2608 = vmatmul.mubr.f32.gmra.mrb[0].mxu0 %v2385
        %v2609 = vpop.f32.mrb[0].mxu0
        %v2610 = vadd.f32 0.0, %v2609
        %v2611 = vpop.f32.mrb[0].mxu0
        %2612 = vmatprep.mubr.f32.mxu0 0.0
        %2613 = vmatmul.mubr.f32.gmra.mrb[0].mxu0 %v2388
        %v2614 = vpop.f32.mrb[0].mxu0
        %v2615 = vadd.f32 0.0, %v2614
        %v2616 = vpop.f32.mrb[0].mxu0
        %2617 = vdwg.mxu0
        %v2618 = vadd.f32 %v2223, %v2460
        %v2619 = vadd.f32 %v2228, %v2465
        %v2620 = vadd.f32 %v2233, %v2470
        %v2621 = vadd.f32 %v2238, %v2475
        %v2622 = vadd.f32 %v2243, %v2480
        %v2623 = vadd.f32 %v2248, %v2485
        %v2624 = vadd.f32 %v2253, %v2490
        %v2625 = vadd.f32 %v2258, %v2495
        %v2626 = vadd.f32 %v2263, %v2500
        %v2627 = vadd.f32 %v2268, %v2505
        %v2628 = vadd.f32 %v2273, %v2510
        %v2629 = vadd.f32 %v2278, %v2515
        %v2630 = vadd.f32 %v2283, %v2520
        %v2631 = vadd.f32 %v2288, %v2525
        %v2632 = vadd.f32 %v2293, %v2530
        %v2633 = vadd.f32 %v2298, %v2535
        %v2634 = vadd.f32 %v2303, %v2540
        %v2635 = vadd.f32 %v2308, %v2545
        %v2636 = vadd.f32 %v2313, %v2550
        %v2637 = vadd.f32 %v2318, %v2555
        %v2638 = vadd.f32 %v2323, %v2560
        %v2639 = vadd.f32 %v2328, %v2565
        %v2640 = vadd.f32 %v2333, %v2570
        %v2641 = vadd.f32 %v2338, %v2575
        %v2642 = vadd.f32 %v2343, %v2580
        %v2643 = vadd.f32 %v2348, %v2585
        %v2644 = vadd.f32 %v2353, %v2590
        %v2645 = vadd.f32 %v2358, %v2595
        %v2646 = vadd.f32 %v2363, %v2600
        %v2647 = vadd.f32 %v2368, %v2605
        %v2648 = vadd.f32 %v2373, %v2610
        %v2649 = vadd.f32 %v2378, %v2615
        %v2650 = vld [vmem:[%s4] sm:$0x1]
        %v2652 = vlaneseq
        %v2653 = vshrl.u32 %v2652, 7
        %v2654 = vsub.s32 0, %v2653
        %v2655 = vrot.slane %v2650, %v2654
        %v2657 = vadd.f32 %v2618, %v2655
        %v2658 = vadd.f32 %v2619, %v2655
        %v2659 = vadd.f32 %v2620, %v2655
        %v2660 = vadd.f32 %v2621, %v2655
        %v2661 = vadd.f32 %v2622, %v2655
        %v2662 = vadd.f32 %v2623, %v2655
        %v2663 = vadd.f32 %v2624, %v2655
        %v2664 = vadd.f32 %v2625, %v2655
        %v2665 = vadd.f32 %v2626, %v2655
        %v2666 = vadd.f32 %v2627, %v2655
        %v2667 = vadd.f32 %v2628, %v2655
        %v2668 = vadd.f32 %v2629, %v2655
        %v2669 = vadd.f32 %v2630, %v2655
        %v2670 = vadd.f32 %v2631, %v2655
        %v2671 = vadd.f32 %v2632, %v2655
        %v2672 = vadd.f32 %v2633, %v2655
        %v2673 = vadd.f32 %v2634, %v2655
        %v2674 = vadd.f32 %v2635, %v2655
        %v2675 = vadd.f32 %v2636, %v2655
        %v2676 = vadd.f32 %v2637, %v2655
        %v2677 = vadd.f32 %v2638, %v2655
        %v2678 = vadd.f32 %v2639, %v2655
        %v2679 = vadd.f32 %v2640, %v2655
        %v2680 = vadd.f32 %v2641, %v2655
        %v2681 = vadd.f32 %v2642, %v2655
        %v2682 = vadd.f32 %v2643, %v2655
        %v2683 = vadd.f32 %v2644, %v2655
        %v2684 = vadd.f32 %v2645, %v2655
        %v2685 = vadd.f32 %v2646, %v2655
        %v2686 = vadd.f32 %v2647, %v2655
        %v2687 = vadd.f32 %v2648, %v2655
        %v2688 = vadd.f32 %v2649, %v2655
        %v2689 = vmax.f32 %v2657, 0.0
        %v2690 = vmax.f32 %v2658, 0.0
        %v2691 = vmax.f32 %v2659, 0.0
        %v2692 = vmax.f32 %v2660, 0.0
        %v2693 = vmax.f32 %v2661, 0.0
        %v2694 = vmax.f32 %v2662, 0.0
        %v2695 = vmax.f32 %v2663, 0.0
        %v2696 = vmax.f32 %v2664, 0.0
        %v2697 = vmax.f32 %v2665, 0.0
        %v2698 = vmax.f32 %v2666, 0.0
        %v2699 = vmax.f32 %v2667, 0.0
        %v2700 = vmax.f32 %v2668, 0.0
        %v2701 = vmax.f32 %v2669, 0.0
        %v2702 = vmax.f32 %v2670, 0.0
        %v2703 = vmax.f32 %v2671, 0.0
        %v2704 = vmax.f32 %v2672, 0.0
        %v2705 = vmax.f32 %v2673, 0.0
        %v2706 = vmax.f32 %v2674, 0.0
        %v2707 = vmax.f32 %v2675, 0.0
        %v2708 = vmax.f32 %v2676, 0.0
        %v2709 = vmax.f32 %v2677, 0.0
        %v2710 = vmax.f32 %v2678, 0.0
        %v2711 = vmax.f32 %v2679, 0.0
        %v2712 = vmax.f32 %v2680, 0.0
        %v2713 = vmax.f32 %v2681, 0.0
        %v2714 = vmax.f32 %v2682, 0.0
        %v2715 = vmax.f32 %v2683, 0.0
        %v2716 = vmax.f32 %v2684, 0.0
        %v2717 = vmax.f32 %v2685, 0.0
        %v2718 = vmax.f32 %v2686, 0.0
        %v2719 = vmax.f32 %v2687, 0.0
        %v2720 = vmax.f32 %v2688, 0.0
        %v2721 = vld [vmem:[%s5] sm:$0xf]
        %v2722 = vld [vmem:[%s6] sm:$0x1]
        %v2724 = vlaneseq
        %v2725 = vshrl.u32 %v2724, 7
        %v2726 = vsub.s32 0, %v2725
        %v2727 = vrot.slane %v2722, %v2726
        %v2730 = vsel %vm1742, %v2689, 0
        %v2733 = vsel %vm1742, %v2690, 0
        %v2736 = vsel %vm1742, %v2691, 0
        %v2739 = vsel %vm1742, %v2692, 0
        %v2742 = vsel %vm1742, %v2693, 0
        %v2745 = vsel %vm1742, %v2694, 0
        %v2748 = vsel %vm1742, %v2695, 0
        %v2751 = vsel %vm1742, %v2696, 0
        %v2754 = vsel %vm1742, %v2697, 0
        %v2757 = vsel %vm1742, %v2698, 0
        %v2760 = vsel %vm1742, %v2699, 0
        %v2763 = vsel %vm1742, %v2700, 0
        %v2766 = vsel %vm1742, %v2701, 0
        %v2769 = vsel %vm1742, %v2702, 0
        %v2772 = vsel %vm1742, %v2703, 0
        %v2775 = vsel %vm1742, %v2704, 0
        %v2778 = vsel %vm1742, %v2705, 0
        %v2781 = vsel %vm1742, %v2706, 0
        %v2784 = vsel %vm1742, %v2707, 0
        %v2787 = vsel %vm1742, %v2708, 0
        %v2790 = vsel %vm1742, %v2709, 0
        %v2793 = vsel %vm1742, %v2710, 0
        %v2796 = vsel %vm1742, %v2711, 0
        %v2799 = vsel %vm1742, %v2712, 0
        %v2802 = vsel %vm1742, %v2713, 0
        %v2805 = vsel %vm1742, %v2714, 0
        %v2808 = vsel %vm1742, %v2715, 0
        %v2811 = vsel %vm1742, %v2716, 0
        %v2814 = vsel %vm1742, %v2717, 0
        %v2817 = vsel %vm1742, %v2718, 0
        %v2820 = vsel %vm1742, %v2719, 0
        %v2823 = vsel %vm1742, %v2720, 0
        %v2826 = vsel %vm1918, %v2721, 0
        %2828 = vmatprep.subr.mxu0 0.0
        %2829 = vmatpush1.msra.mxu0 %v2826
        %2830 = vmatprep.subr.mxu0 0.0
        %2831 = vmatpush1.msra.mxu0 0.0
        %2832 = vmatprep.subr.mxu0 0.0
        %2833 = vmatpush1.msra.mxu0 0.0
        %2834 = vmatprep.subr.mxu0 0.0
        %2835 = vmatpush1.msra.mxu0 0.0
        %2836 = vmatprep.subr.mxu0 0.0
        %2837 = vmatpush1.msra.mxu0 0.0
        %2838 = vmatprep.subr.mxu0 0.0
        %2839 = vmatpush1.msra.mxu0 0.0
        %2840 = vmatprep.subr.mxu0 0.0
        %2841 = vmatpush1.msra.mxu0 0.0
        %2842 = vmatprep.subr.mxu0 0.0
        %2843 = vmatpush1.msra.mxu0 0.0
        %2844 = vmatprep.subr.mxu0 0.0
        %2845 = vmatpush1.msra.mxu0 0.0
        %2846 = vmatprep.subr.mxu0 0.0
        %2847 = vmatpush1.msra.mxu0 0.0
        %2848 = vmatprep.subr.mxu0 0.0
        %2849 = vmatpush1.msra.mxu0 0.0
        %2850 = vmatprep.subr.mxu0 0.0
        %2851 = vmatpush1.msra.mxu0 0.0
        %2852 = vmatprep.subr.mxu0 0.0
        %2853 = vmatpush1.msra.mxu0 0.0
        %2854 = vmatprep.subr.mxu0 0.0
        %2855 = vmatpush1.msra.mxu0 0.0
        %2856 = vmatprep.subr.mxu0 0.0
        %2857 = vmatpush1.msra.mxu0 0.0
        %2858 = vmatprep.subr.mxu0 0.0
        %2859 = vmatpush1.msra.mxu0 0.0
        %2860 = vmatprep.subr.mxu0 0.0
        %2861 = vmatpush1.msra.mxu0 0.0
        %2862 = vmatprep.subr.mxu0 0.0
        %2863 = vmatpush1.msra.mxu0 0.0
        %2864 = vmatprep.subr.mxu0 0.0
        %2865 = vmatpush1.msra.mxu0 0.0
        %2866 = vmatprep.subr.mxu0 0.0
        %2867 = vmatpush1.msra.mxu0 0.0
        %2868 = vmatprep.subr.mxu0 0.0
        %2869 = vmatpush1.msra.mxu0 0.0
        %2870 = vmatprep.subr.mxu0 0.0
        %2871 = vmatpush1.msra.mxu0 0.0
        %2872 = vmatprep.subr.mxu0 0.0
        %2873 = vmatpush1.msra.mxu0 0.0
        %2874 = vmatprep.subr.mxu0 0.0
        %2875 = vmatpush1.msra.mxu0 0.0
        %2876 = vmatprep.subr.mxu0 0.0
        %2877 = vmatpush1.msra.mxu0 0.0
        %2878 = vmatprep.subr.mxu0 0.0
        %2879 = vmatpush1.msra.mxu0 0.0
        %2880 = vmatprep.subr.mxu0 0.0
        %2881 = vmatpush1.msra.mxu0 0.0
        %2882 = vmatprep.subr.mxu0 0.0
        %2883 = vmatpush1.msra.mxu0 0.0
        %2884 = vmatprep.subr.mxu0 0.0
        %2885 = vmatpush1.msra.mxu0 0.0
        %2886 = vmatprep.subr.mxu0 0.0
        %2887 = vmatpush1.msra.mxu0 0.0
        %2888 = vmatprep.subr.mxu0 0.0
        %2889 = vmatpush1.msra.mxu0 0.0
        %2890 = vmatprep.subr.mxu0 0.0
        %2891 = vmatpush1.msra.mxu0 0.0
        %2892 = vmatprep.mubr.f32.mxu0 0.0
        %2893 = vmatmul.mubr.f32.gmra.mrb[0].mxu0 %v2730
        %v2894 = vpop.f32.mrb[0].mxu0
        %v2895 = vadd.f32 %v2727, %v2894
        %v2896 = vpop.f32.mrb[0].mxu0
        %2897 = vmatprep.mubr.f32.mxu0 0.0
        %2898 = vmatmul.mubr.f32.gmra.mrb[0].mxu0 %v2733
        %v2899 = vpop.f32.mrb[0].mxu0
        %v2900 = vadd.f32 %v2727, %v2899
        %v2901 = vpop.f32.mrb[0].mxu0
        %2902 = vmatprep.mubr.f32.mxu0 0.0
        %2903 = vmatmul.mubr.f32.gmra.mrb[0].mxu0 %v2736
        %v2904 = vpop.f32.mrb[0].mxu0
        %v2905 = vadd.f32 %v2727, %v2904
        %v2906 = vpop.f32.mrb[0].mxu0
        %2907 = vmatprep.mubr.f32.mxu0 0.0
        %2908 = vmatmul.mubr.f32.gmra.mrb[0].mxu0 %v2739
        %v2909 = vpop.f32.mrb[0].mxu0
        %v2910 = vadd.f32 %v2727, %v2909
        %v2911 = vpop.f32.mrb[0].mxu0
        %2912 = vmatprep.mubr.f32.mxu0 0.0
        %2913 = vmatmul.mubr.f32.gmra.mrb[0].mxu0 %v2742
        %v2914 = vpop.f32.mrb[0].mxu0
        %v2915 = vadd.f32 %v2727, %v2914
        %v2916 = vpop.f32.mrb[0].mxu0
        %2917 = vmatprep.mubr.f32.mxu0 0.0
        %2918 = vmatmul.mubr.f32.gmra.mrb[0].mxu0 %v2745
        %v2919 = vpop.f32.mrb[0].mxu0
        %v2920 = vadd.f32 %v2727, %v2919
        %v2921 = vpop.f32.mrb[0].mxu0
        %2922 = vmatprep.mubr.f32.mxu0 0.0
        %2923 = vmatmul.mubr.f32.gmra.mrb[0].mxu0 %v2748
        %v2924 = vpop.f32.mrb[0].mxu0
        %v2925 = vadd.f32 %v2727, %v2924
        %v2926 = vpop.f32.mrb[0].mxu0
        %2927 = vmatprep.mubr.f32.mxu0 0.0
        %2928 = vmatmul.mubr.f32.gmra.mrb[0].mxu0 %v2751
        %v2929 = vpop.f32.mrb[0].mxu0
        %v2930 = vadd.f32 %v2727, %v2929
        %v2931 = vpop.f32.mrb[0].mxu0
        %2932 = vmatprep.mubr.f32.mxu0 0.0
        %2933 = vmatmul.mubr.f32.gmra.mrb[0].mxu0 %v2754
        %v2934 = vpop.f32.mrb[0].mxu0
        %v2935 = vadd.f32 %v2727, %v2934
        %v2936 = vpop.f32.mrb[0].mxu0
        %2937 = vmatprep.mubr.f32.mxu0 0.0
        %2938 = vmatmul.mubr.f32.gmra.mrb[0].mxu0 %v2757
        %v2939 = vpop.f32.mrb[0].mxu0
        %v2940 = vadd.f32 %v2727, %v2939
        %v2941 = vpop.f32.mrb[0].mxu0
        %2942 = vmatprep.mubr.f32.mxu0 0.0
        %2943 = vmatmul.mubr.f32.gmra.mrb[0].mxu0 %v2760
        %v2944 = vpop.f32.mrb[0].mxu0
        %v2945 = vadd.f32 %v2727, %v2944
        %v2946 = vpop.f32.mrb[0].mxu0
        %2947 = vmatprep.mubr.f32.mxu0 0.0
        %2948 = vmatmul.mubr.f32.gmra.mrb[0].mxu0 %v2763
        %v2949 = vpop.f32.mrb[0].mxu0
        %v2950 = vadd.f32 %v2727, %v2949
        %v2951 = vpop.f32.mrb[0].mxu0
        %2952 = vmatprep.mubr.f32.mxu0 0.0
        %2953 = vmatmul.mubr.f32.gmra.mrb[0].mxu0 %v2766
        %v2954 = vpop.f32.mrb[0].mxu0
        %v2955 = vadd.f32 %v2727, %v2954
        %v2956 = vpop.f32.mrb[0].mxu0
        %2957 = vmatprep.mubr.f32.mxu0 0.0
        %2958 = vmatmul.mubr.f32.gmra.mrb[0].mxu0 %v2769
        %v2959 = vpop.f32.mrb[0].mxu0
        %v2960 = vadd.f32 %v2727, %v2959
        %v2961 = vpop.f32.mrb[0].mxu0
        %2962 = vmatprep.mubr.f32.mxu0 0.0
        %2963 = vmatmul.mubr.f32.gmra.mrb[0].mxu0 %v2772
        %v2964 = vpop.f32.mrb[0].mxu0
        %v2965 = vadd.f32 %v2727, %v2964
        %v2966 = vpop.f32.mrb[0].mxu0
        %2967 = vmatprep.mubr.f32.mxu0 0.0
        %2968 = vmatmul.mubr.f32.gmra.mrb[0].mxu0 %v2775
        %v2969 = vpop.f32.mrb[0].mxu0
        %v2970 = vadd.f32 %v2727, %v2969
        %v2971 = vpop.f32.mrb[0].mxu0
        %2972 = vmatprep.mubr.f32.mxu0 0.0
        %2973 = vmatmul.mubr.f32.gmra.mrb[0].mxu0 %v2778
        %v2974 = vpop.f32.mrb[0].mxu0
        %v2975 = vadd.f32 %v2727, %v2974
        %v2976 = vpop.f32.mrb[0].mxu0
        %2977 = vmatprep.mubr.f32.mxu0 0.0
        %2978 = vmatmul.mubr.f32.gmra.mrb[0].mxu0 %v2781
        %v2979 = vpop.f32.mrb[0].mxu0
        %v2980 = vadd.f32 %v2727, %v2979
        %v2981 = vpop.f32.mrb[0].mxu0
        %2982 = vmatprep.mubr.f32.mxu0 0.0
        %2983 = vmatmul.mubr.f32.gmra.mrb[0].mxu0 %v2784
        %v2984 = vpop.f32.mrb[0].mxu0
        %v2985 = vadd.f32 %v2727, %v2984
        %v2986 = vpop.f32.mrb[0].mxu0
        %2987 = vmatprep.mubr.f32.mxu0 0.0
        %2988 = vmatmul.mubr.f32.gmra.mrb[0].mxu0 %v2787
        %v2989 = vpop.f32.mrb[0].mxu0
        %v2990 = vadd.f32 %v2727, %v2989
        %v2991 = vpop.f32.mrb[0].mxu0
        %2992 = vmatprep.mubr.f32.mxu0 0.0
        %2993 = vmatmul.mubr.f32.gmra.mrb[0].mxu0 %v2790
        %v2994 = vpop.f32.mrb[0].mxu0
        %v2995 = vadd.f32 %v2727, %v2994
        %v2996 = vpop.f32.mrb[0].mxu0
        %2997 = vmatprep.mubr.f32.mxu0 0.0
        %2998 = vmatmul.mubr.f32.gmra.mrb[0].mxu0 %v2793
        %v2999 = vpop.f32.mrb[0].mxu0
        %v3000 = vadd.f32 %v2727, %v2999
        %v3001 = vpop.f32.mrb[0].mxu0
        %3002 = vmatprep.mubr.f32.mxu0 0.0
        %3003 = vmatmul.mubr.f32.gmra.mrb[0].mxu0 %v2796
        %v3004 = vpop.f32.mrb[0].mxu0
        %v3005 = vadd.f32 %v2727, %v3004
        %v3006 = vpop.f32.mrb[0].mxu0
        %3007 = vmatprep.mubr.f32.mxu0 0.0
        %3008 = vmatmul.mubr.f32.gmra.mrb[0].mxu0 %v2799
        %v3009 = vpop.f32.mrb[0].mxu0
        %v3010 = vadd.f32 %v2727, %v3009
        %v3011 = vpop.f32.mrb[0].mxu0
        %3012 = vmatprep.mubr.f32.mxu0 0.0
        %3013 = vmatmul.mubr.f32.gmra.mrb[0].mxu0 %v2802
        %v3014 = vpop.f32.mrb[0].mxu0
        %v3015 = vadd.f32 %v2727, %v3014
        %v3016 = vpop.f32.mrb[0].mxu0
        %3017 = vmatprep.mubr.f32.mxu0 0.0
        %3018 = vmatmul.mubr.f32.gmra.mrb[0].mxu0 %v2805
        %v3019 = vpop.f32.mrb[0].mxu0
        %v3020 = vadd.f32 %v2727, %v3019
        %v3021 = vpop.f32.mrb[0].mxu0
        %3022 = vmatprep.mubr.f32.mxu0 0.0
        %3023 = vmatmul.mubr.f32.gmra.mrb[0].mxu0 %v2808
        %v3024 = vpop.f32.mrb[0].mxu0
        %v3025 = vadd.f32 %v2727, %v3024
        %v3026 = vpop.f32.mrb[0].mxu0
        %3027 = vmatprep.mubr.f32.mxu0 0.0
        %3028 = vmatmul.mubr.f32.gmra.mrb[0].mxu0 %v2811
        %v3029 = vpop.f32.mrb[0].mxu0
        %v3030 = vadd.f32 %v2727, %v3029
        %v3031 = vpop.f32.mrb[0].mxu0
        %3032 = vmatprep.mubr.f32.mxu0 0.0
        %3033 = vmatmul.mubr.f32.gmra.mrb[0].mxu0 %v2814
        %v3034 = vpop.f32.mrb[0].mxu0
        %v3035 = vadd.f32 %v2727, %v3034
        %v3036 = vpop.f32.mrb[0].mxu0
        %3037 = vmatprep.mubr.f32.mxu0 0.0
        %3038 = vmatmul.mubr.f32.gmra.mrb[0].mxu0 %v2817
        %v3039 = vpop.f32.mrb[0].mxu0
        %v3040 = vadd.f32 %v2727, %v3039
        %v3041 = vpop.f32.mrb[0].mxu0
        %3042 = vmatprep.mubr.f32.mxu0 0.0
        %3043 = vmatmul.mubr.f32.gmra.mrb[0].mxu0 %v2820
        %v3044 = vpop.f32.mrb[0].mxu0
        %v3045 = vadd.f32 %v2727, %v3044
        %v3046 = vpop.f32.mrb[0].mxu0
        %3047 = vmatprep.mubr.f32.mxu0 0.0
        %3048 = vmatmul.mubr.f32.gmra.mrb[0].mxu0 %v2823
        %v3049 = vpop.f32.mrb[0].mxu0
        %v3050 = vadd.f32 %v2727, %v3049
        %v3051 = vpop.f32.mrb[0].mxu0
        %3052 = vdwg.mxu0
        %3053 = vst [vmem:[%s386] sm:$0xff] %v2895
        %3054 = vst [vmem:[%s386 + $0x8] sm:$0xff] %v2900
        %3055 = vst [vmem:[%s386 + $0x10] sm:$0xff] %v2905
        %3056 = vst [vmem:[%s386 + $0x18] sm:$0xff] %v2910
        %3057 = vst [vmem:[%s386 + $0x20] sm:$0xff] %v2915
        %3058 = vst [vmem:[%s386 + $0x28] sm:$0xff] %v2920
        %3059 = vst [vmem:[%s386 + $0x30] sm:$0xff] %v2925
        %3060 = vst [vmem:[%s386 + $0x38] sm:$0xff] %v2930
        %3061 = vst [vmem:[%s386 + $0x40] sm:$0xff] %v2935
        %3062 = vst [vmem:[%s386 + $0x48] sm:$0xff] %v2940
        %3063 = vst [vmem:[%s386 + $0x50] sm:$0xff] %v2945
        %3064 = vst [vmem:[%s386 + $0x58] sm:$0xff] %v2950
        %3065 = vst [vmem:[%s386 + $0x60] sm:$0xff] %v2955
        %3066 = vst [vmem:[%s386 + $0x68] sm:$0xff] %v2960
        %3067 = vst [vmem:[%s386 + $0x70] sm:$0xff] %v2965
        %3068 = vst [vmem:[%s386 + $0x78] sm:$0xff] %v2970
        %3069 = vst [vmem:[%s386 + $0x80] sm:$0xff] %v2975
        %3070 = vst [vmem:[%s386 + $0x88] sm:$0xff] %v2980
        %3071 = vst [vmem:[%s386 + $0x90] sm:$0xff] %v2985
        %3072 = vst [vmem:[%s386 + $0x98] sm:$0xff] %v2990
        %3073 = vst [vmem:[%s386 + $0xa0] sm:$0xff] %v2995
        %3074 = vst [vmem:[%s386 + $0xa8] sm:$0xff] %v3000
        %3075 = vst [vmem:[%s386 + $0xb0] sm:$0xff] %v3005
        %3076 = vst [vmem:[%s386 + $0xb8] sm:$0xff] %v3010
        %3077 = vst [vmem:[%s386 + $0xc0] sm:$0xff] %v3015
        %3078 = vst [vmem:[%s386 + $0xc8] sm:$0xff] %v3020
        %3079 = vst [vmem:[%s386 + $0xd0] sm:$0xff] %v3025
        %3080 = vst [vmem:[%s386 + $0xd8] sm:$0xff] %v3030
        %3081 = vst [vmem:[%s386 + $0xe0] sm:$0xff] %v3035
        %3082 = vst [vmem:[%s386 + $0xe8] sm:$0xff] %v3040
        %3083 = vst [vmem:[%s386 + $0xf0] sm:$0xff] %v3045
        %3084 = vst [vmem:[%s386 + $0xf8] sm:$0xff] %v3050
        %s3085 = sand.u32 %s227, 1
        %s3086 = scalar_lea.sflag [#allocation3], %s3085
        %s3087 = sand.u32 %s227, 1
        %s3088 = smul.addr %s3087, 256
        %s3089 = scalar_lea.vmem [#allocation2], %s3088
        // Predicated region
        $region49: #{tpu_custom_call.1} parent=47 // pred_check
          %p3090 = pneg %p237
        $region50: #{tpu_custom_call.1} parent=47 // pred_check_branch
          %3092 = sbr.rel (%p3090) target = $region52
        $region51: #{tpu_custom_call.1} parent=47 // pred_region
          %s3093 = smul.u32 32, %s26
          %s3095 = ssub.s32 4096, 4096
          %3096 = vsyncadd %s3086, %s3095
          %s3097 = smul.addr %s25, 32
          %s3098 = sadd.s32 %s3093, %s3097
          %s3099 = smul.addr %s3098, 128
          %s3100 = scalar_lea.hbm %s7, %s3099
          %s3101 = sshll.u32 %s3089, 4
          %s3102 = int_to_ptr.vmem [resolvable:$true] %s3101
          %3107 = dma.vmem_to_hbm [thread:$0]  %s3102, 4096, %s3100, %s3086, 128, 128, 8
        $region52: #{tpu_custom_call.1} parent=47 // pred_fallthru
          _
      $region48: #{tpu_custom_call.1} parent=5 // pred_fallthru
        _
      %p3108 = scmp.le.s32.totalorder 2, %s16
      // Predicated region
      $region53: #{tpu_custom_call.1} parent=5 // pred_check
        %p3109 = pneg %p3108
      $region54: #{tpu_custom_call.1} parent=5 // pred_check_branch
        %3111 = sbr.rel (%p3109) target = $region56
      $region55: #{tpu_custom_call.1} parent=5 // pred_region
        %s3112 = ssub.s32 %s16, 2
        // Predicated region
        $region57: #{tpu_custom_call.1} parent=55 // pred_check
          %p3113 = pneg %p243
        $region58: #{tpu_custom_call.1} parent=55 // pred_check_branch
          %3115 = sbr.rel (%p3113) target = $region60
        $region59: #{tpu_custom_call.1} parent=55 // pred_region
          %s3116 = sand.u32 %s228, 1
          %s3117 = scalar_lea.sflag [#allocation3], %s3116
          %s3118 = sand.u32 %s228, 1
          %s3119 = smul.addr %s3118, 256
          %s3120 = scalar_lea.vmem [#allocation2], %s3119
          %3121 = dma.done %s3117, 4096
        $region60: #{tpu_custom_call.1} parent=55 // pred_fallthru
          _
      $region56: #{tpu_custom_call.1} parent=5 // pred_fallthru
        _
    $region6: #{tpu_custom_call.1} parent=1 // loop_footer
      %s20 = sadd.s32 1, %s16
    $region7: #{tpu_custom_call.1} parent=1 // loop_footer_branch
      %15 = sbr.rel target = $region3
    $region8: #{tpu_custom_call.1} parent=1 // loop_exit
      _
    %3122 = vsyncpa [#allocation3], 1
    %s3123 = scalar_lea.sflag [#allocation3], 1
    %3124 = vsyncpa %s3123, 1

</llo_original>
